<compile_context>
chip_gen: v5e
topology: v5e:2x2
jax: 0.10.0
libtpu: 0.0.40
codegen_flags: <defaults>
</compile_context>

<pallas_src>
import functools

import jax
import jax.numpy as jnp
from jax.experimental import pallas as pl
from jax.experimental.pallas import tpu as pltpu

EPS = 1e-5


# --------------------------------------------------------------- kernel math
def _bn(y, gamma, beta):
    """PyTorch training-mode BatchNorm2d on [C, R]: per-channel batch stats over
    all R = N*H*W positions (lanes), biased variance, eps=1e-5, affine."""
    inv_n = 1.0 / y.shape[1]
    mean = jnp.sum(y, axis=1, keepdims=True) * inv_n
    ex2 = jnp.sum(y * y, axis=1, keepdims=True) * inv_n
    var = ex2 - mean * mean                      # one-pass biased variance
    return gamma * (y - mean) * jax.lax.rsqrt(var + EPS) + beta


def make_unit_kernel(stride, B, H, W, C_in, C_b, C_f):
    """Fused unit: conv1+BN+ReLU -> dw3x3+BN -> 1x1+BN -> shortcut/concat -> ReLU."""
    R = B * H * W
    PAD = W + 1                                   # max |flattened 3x3 tap offset|

    def kernel(*refs):
        if stride == 2:
            (x_ref, hw_ref, w1_ref, g1_ref, be1_ref, wdw_ref, gdw_ref, bedw_ref,
             w3_ref, g3_ref, be3_ref, sel_ref, o_ref, h1pad_ref) = refs
        else:
            (x_ref, hw_ref, w1_ref, g1_ref, be1_ref, wdw_ref, gdw_ref, bedw_ref,
             w3_ref, g3_ref, be3_ref, o_ref, h1pad_ref) = refs
            sel_ref = None

        h_idx = hw_ref[0:1, :]                    # [1, R] int32 per-lane h coord
        w_idx = hw_ref[1:2, :]                    # [1, R] int32 per-lane w coord

        def taps_3x3(padded_ref, weights):
            """Sum of the 9 (optionally per-channel-weighted) zero-padded 3x3 taps
            at full resolution. padded_ref is [C, R + 2*PAD]; each tap is a shifted
            window load; the mask zeroes reads that crossed a row/batch boundary."""
            acc = None
            for kh in range(3):
                for kw in range(3):
                    k = kh * 3 + kw
                    d = (kh - 1) * W + (kw - 1)
                    tap = padded_ref[:, pl.ds(PAD + d, R)]
                    if d != 0:                    # center tap is always valid
                        valid = ((h_idx >= 1 - kh) & (h_idx < H + 1 - kh) &
                                 (w_idx >= 1 - kw) & (w_idx < W + 1 - kw))
                        tap = jnp.where(valid, tap, 0.0)
                    if weights is not None:
                        tap = tap * weights[:, k:k + 1]
                    acc = tap if acc is None else acc + tap
            return acc

        # conv1: grouped 1x1 conv (block-diagonal dense weight, channel shuffle
        # pre-folded into its rows) + BN + ReLU.  (conv bias cancelled by BN.)
        x = x_ref[:, pl.ds(PAD, R)] if stride == 2 else x_ref[...]
        y1 = jnp.dot(w1_ref[...], x, preferred_element_type=jnp.float32)
        h1 = jnp.maximum(_bn(y1, g1_ref[...], be1_ref[...]), 0.0)

        # depthwise 3x3 (pad 1) + BN; stride-2 downsample via a 0/1 selection matmul.
        h1pad_ref[...] = jnp.zeros_like(h1pad_ref)
        h1pad_ref[:, pl.ds(PAD, R)] = h1
        acc = taps_3x3(h1pad_ref, wdw_ref[...])
        if stride == 2:
            acc = jnp.dot(acc, sel_ref[...], preferred_element_type=jnp.float32)
        h2 = _bn(acc, gdw_ref[...], bedw_ref[...])

        # final grouped 1x1 conv (block-diagonal dense) + BN
        y3 = jnp.dot(w3_ref[...], h2, preferred_element_type=jnp.float32)
        out = _bn(y3, g3_ref[...], be3_ref[...])

        if stride == 1:
            # identity shortcut, then ReLU
            o_ref[...] = jnp.maximum(out + x, 0.0)
        else:
            # AvgPool2d(3,2,1) shortcut (count_include_pad=True), in-kernel concat
            # along channels, ReLU (relu(cat) == cat(relu, relu)).
            pool = taps_3x3(x_ref, None) * (1.0 / 9.0)
            pool = jnp.dot(pool, sel_ref[...], preferred_element_type=jnp.float32)
            o_ref[0:C_in, :] = jnp.maximum(pool, 0.0)
            o_ref[C_in:C_in + C_f, :] = jnp.maximum(out, 0.0)

    return kernel


# --------------------------------------------------------------- pallas glue
def _full_spec(shape):
    return pl.BlockSpec(tuple(shape), lambda i: (0,) * len(shape))


def _downsample_sel(B, H, W, stride):
    """0/1 matrix [R, Rs] selecting the strided window centers (k=3, pad=1)."""
    Ho = (H - 1) // stride + 1
    Wo = (W - 1) // stride + 1
    R, Rs = B * H * W, B * Ho * Wo
    ro = jnp.arange(Rs, dtype=jnp.int32)
    b = ro // (Ho * Wo)
    ho = (ro // Wo) % Ho
    wo = ro % Wo
    ri = b * (H * W) + (ho * stride) * W + (wo * stride)
    sel = jnp.zeros((R, Rs), jnp.float32).at[ri, ro].set(1.0)
    return sel, Ho, Wo


@functools.partial(jax.jit, static_argnames=("stride", "group"))
def shufflenet_unit_forward(x_nchw, params, stride, group):
    del group  # channel shuffle is folded into the weights at init time
    b, c_in, h, w = x_nchw.shape
    r = b * h * w
    pad = w + 1
    c_b = params["w1_dense"].shape[0]
    c_f = params["w3_dense"].shape[0]

    # channels-on-sublanes / flattened-spatial-on-lanes: NCHW -> [C, B*H*W]
    x2d = jnp.transpose(x_nchw, (1, 0, 2, 3)).reshape(c_in, r).astype(jnp.float32)

    # per-lane (h, w) coordinates for the in-kernel 3x3 tap validity masks
    pix = jnp.arange(r, dtype=jnp.int32)
    hw_idx = jnp.stack([(pix // w) % h, pix % w], axis=0)      # [2, R] int32

    inputs = [x2d, hw_idx, params["w1_dense"], params["g1"], params["be1"],
              params["wdw"], params["gdw"], params["bedw"],
              params["w3_dense"], params["g3"], params["be3"]]

    if stride == 1:
        assert c_in == c_f, "stride-1 unit requires in_channels == out_channels"
        ho, wo, rs, c_total = h, w, r, c_f
    else:
        sel, ho, wo = _downsample_sel(b, h, w, stride)
        rs = b * ho * wo
        c_total = c_in + c_f
        inputs[0] = jnp.pad(x2d, ((0, 0), (pad, pad)))         # halo for avgpool taps
        inputs.append(sel)

    out2d = pl.pallas_call(
        make_unit_kernel(stride, b, h, w, c_in, c_b, c_f),
        grid=(1,),
        in_specs=[_full_spec(a.shape) for a in inputs],
        out_specs=pl.BlockSpec((c_total, rs), lambda i: (0, 0)),
        out_shape=jax.ShapeDtypeStruct((c_total, rs), jnp.float32),
        scratch_shapes=[pltpu.VMEM((c_b, r + 2 * pad), jnp.float32)],  # h1 + halo
    )(*inputs)

    return jnp.transpose(out2d.reshape(c_total, b, ho, wo), (1, 0, 2, 3))  # NCHW


# --------------------------------------------------------------- parameters
def _shuffle_perm(c, group):
    # torch channel_shuffle: output channel j reads input channel (j%g)*(c//g)+(j//g)
    j = jnp.arange(c)
    return (j % group) * (c // group) + (j // group)


def _grouped_pw_to_dense(wt, groups):
    # wt: [C_out, C_in//groups] grouped 1x1 weight -> block-diagonal [C_out, C_in]
    c_out, c_in_g = wt.shape
    c_out_g = c_out // groups
    dense = jnp.zeros((c_out, c_in_g * groups), wt.dtype)
    for gi in range(groups):
        dense = dense.at[gi * c_out_g:(gi + 1) * c_out_g,
                         gi * c_in_g:(gi + 1) * c_in_g].set(
                             wt[gi * c_out_g:(gi + 1) * c_out_g, :])
    return dense


def init_params(key, c_in, c_out, stride, group):
    c_b = c_out // 4
    c_f = c_out if stride == 1 else c_out - c_in
    ks = jax.random.split(key, 9)
    nrm = lambda k, shape, s=0.1: s * jax.random.normal(k, shape, dtype=jnp.float32)

    w1 = nrm(ks[0], (c_b, c_in // group))        # conv1 grouped 1x1
    wdw = nrm(ks[1], (c_b, 3, 3))                # depthwise 3x3
    w3 = nrm(ks[2], (c_f, c_b // group))         # final grouped 1x1

    # Fold channel_shuffle into conv1: fused output channel j is original channel
    # perm[j], so its BN affine params are permuted identically.
    perm = _shuffle_perm(c_b, group)
    # NOTE: conv biases are omitted on purpose - a bias added right before a
    # batch-statistics BatchNorm is exactly cancelled by the mean subtraction.
    return {
        "w1_dense": _grouped_pw_to_dense(w1, group)[perm, :],   # [c_b, c_in]
        "g1": (1.0 + nrm(ks[3], (c_b, 1)))[perm, :],
        "be1": nrm(ks[4], (c_b, 1))[perm, :],
        "wdw": wdw.reshape(c_b, 9),                             # tap order k = kh*3+kw
        "gdw": 1.0 + nrm(ks[5], (c_b, 1)),
        "bedw": nrm(ks[6], (c_b, 1)),
        "w3_dense": _grouped_pw_to_dense(w3, group),            # [c_f, c_b]
        "g3": 1.0 + nrm(ks[7], (c_f, 1)),
        "be3": nrm(ks[8], (c_f, 1)),
    }


if __name__ == "__main__":
    key = jax.random.PRNGKey(0)
    k_x1, k_p1, k_x2, k_p2 = jax.random.split(key, 4)
    group = 2
    b, hgt, wid = 2, 16, 16

    # stride=1 unit (identity shortcut + residual add); in_channels == out_channels
    c_in1, c_out1 = 16, 16
    x1 = jax.random.normal(k_x1, (b, c_in1, hgt, wid), dtype=jnp.float32)
    p1 = init_params(k_p1, c_in1, c_out1, stride=1, group=group)
    y1 = shufflenet_unit_forward(x1, p1, stride=1, group=group)
    jax.block_until_ready(y1)
    assert y1.shape == (b, c_out1, hgt, wid)

    # stride=2 unit (AvgPool2d(3,2,1) shortcut + channel concat)
    c_in2, c_out2 = 8, 16
    x2 = jax.random.normal(k_x2, (b, c_in2, hgt, wid), dtype=jnp.float32)
    p2 = init_params(k_p2, c_in2, c_out2, stride=2, group=group)
    y2 = shufflenet_unit_forward(x2, p2, stride=2, group=group)
    jax.block_until_ready(y2)
    assert y2.shape == (b, c_out2, hgt // 2, wid // 2)

    print("KERNEL_OK")
</pallas_src>

<mosaic_0001>
module attributes {stable_mosaic.version = 11 : i64} {
  func.func @kernel(%arg0: i32, %arg1: memref<16x512xf32, #tpu.memory_space<vmem>>, %arg2: memref<2x512xi32, #tpu.memory_space<vmem>>, %arg3: memref<4x16xf32, #tpu.memory_space<vmem>>, %arg4: memref<4x1xf32, #tpu.memory_space<vmem>>, %arg5: memref<4x1xf32, #tpu.memory_space<vmem>>, %arg6: memref<4x9xf32, #tpu.memory_space<vmem>>, %arg7: memref<4x1xf32, #tpu.memory_space<vmem>>, %arg8: memref<4x1xf32, #tpu.memory_space<vmem>>, %arg9: memref<16x4xf32, #tpu.memory_space<vmem>>, %arg10: memref<16x1xf32, #tpu.memory_space<vmem>>, %arg11: memref<16x1xf32, #tpu.memory_space<vmem>>, %arg12: memref<16x512xf32, #tpu.memory_space<vmem>>, %arg13: memref<4x546xf32, #tpu.memory_space<vmem>>) attributes {dimension_semantics = [#tpu.dimension_semantics<arbitrary>], iteration_bounds = array<i64: 1>, scalar_prefetch = 0 : i64, scratch_operands = 1 : i64, tpu.core_type = #tpu.core_type<tc>, window_params = [{pipeline_mode = #tpu.pipeline_mode<synchronous>, transform_indices = @transform_0, window_bounds = array<i64: 16, 512>}, {pipeline_mode = #tpu.pipeline_mode<synchronous>, transform_indices = @transform_1, window_bounds = array<i64: 2, 512>}, {pipeline_mode = #tpu.pipeline_mode<synchronous>, transform_indices = @transform_2, window_bounds = array<i64: 4, 16>}, {pipeline_mode = #tpu.pipeline_mode<synchronous>, transform_indices = @transform_3, window_bounds = array<i64: 4, 1>}, {pipeline_mode = #tpu.pipeline_mode<synchronous>, transform_indices = @transform_4, window_bounds = array<i64: 4, 1>}, {pipeline_mode = #tpu.pipeline_mode<synchronous>, transform_indices = @transform_5, window_bounds = array<i64: 4, 9>}, {pipeline_mode = #tpu.pipeline_mode<synchronous>, transform_indices = @transform_6, window_bounds = array<i64: 4, 1>}, {pipeline_mode = #tpu.pipeline_mode<synchronous>, transform_indices = @transform_7, window_bounds = array<i64: 4, 1>}, {pipeline_mode = #tpu.pipeline_mode<synchronous>, transform_indices = @transform_8, window_bounds = array<i64: 16, 4>}, {pipeline_mode = #tpu.pipeline_mode<synchronous>, transform_indices = @transform_9, window_bounds = array<i64: 16, 1>}, {pipeline_mode = #tpu.pipeline_mode<synchronous>, transform_indices = @transform_10, window_bounds = array<i64: 16, 1>}, {pipeline_mode = #tpu.pipeline_mode<synchronous>, transform_indices = @transform_11, window_bounds = array<i64: 16, 512>}]} {
    %c0 = arith.constant 0 : index
    %c0_0 = arith.constant 0 : index
    %0 = vector.load %arg2[%c0, %c0_0] : memref<2x512xi32, #tpu.memory_space<vmem>>, vector<1x512xi32>
    %c1 = arith.constant 1 : index
    %c0_1 = arith.constant 0 : index
    %1 = vector.load %arg2[%c1, %c0_1] : memref<2x512xi32, #tpu.memory_space<vmem>>, vector<1x512xi32>
    %c0_2 = arith.constant 0 : index
    %c0_3 = arith.constant 0 : index
    %2 = vector.load %arg1[%c0_2, %c0_3] : memref<16x512xf32, #tpu.memory_space<vmem>>, vector<16x512xf32>
    %c0_4 = arith.constant 0 : index
    %c0_5 = arith.constant 0 : index
    %3 = vector.load %arg3[%c0_4, %c0_5] : memref<4x16xf32, #tpu.memory_space<vmem>>, vector<4x16xf32>
    %cst = arith.constant dense<0.000000e+00> : vector<4x512xf32>
    %4 = tpu.matmul %3, %2, %cst {dimension_numbers = #tpu.dot_dimension_numbers<[1], [0], [0], [1], [0, 0, 1, 1], [], []>} : vector<4x16xf32>, vector<16x512xf32>, vector<4x512xf32> -> vector<4x512xf32>
    %c0_6 = arith.constant 0 : index
    %c0_7 = arith.constant 0 : index
    %5 = vector.load %arg4[%c0_6, %c0_7] : memref<4x1xf32, #tpu.memory_space<vmem>>, vector<4x1xf32>
    %c0_8 = arith.constant 0 : index
    %c0_9 = arith.constant 0 : index
    %6 = vector.load %arg5[%c0_8, %c0_9] : memref<4x1xf32, #tpu.memory_space<vmem>>, vector<4x1xf32>
    %cst_10 = arith.constant dense<0.000000e+00> : vector<4xf32>
    %7 = vector.multi_reduction <add>, %4, %cst_10 [1] : vector<4x512xf32> to vector<4xf32>
    %8 = vector.shape_cast %7 : vector<4xf32> to vector<4x1xf32>
    %cst_11 = arith.constant 0.001953125 : f32
    %9 = vector.broadcast %cst_11 : f32 to vector<4x1xf32>
    %10 = arith.mulf %8, %9 : vector<4x1xf32>
    %11 = arith.mulf %4, %4 : vector<4x512xf32>
    %cst_12 = arith.constant dense<0.000000e+00> : vector<4xf32>
    %12 = vector.multi_reduction <add>, %11, %cst_12 [1] : vector<4x512xf32> to vector<4xf32>
    %13 = vector.shape_cast %12 : vector<4xf32> to vector<4x1xf32>
    %cst_13 = arith.constant 0.001953125 : f32
    %14 = vector.broadcast %cst_13 : f32 to vector<4x1xf32>
    %15 = arith.mulf %13, %14 : vector<4x1xf32>
    %16 = arith.mulf %10, %10 : vector<4x1xf32>
    %17 = arith.subf %15, %16 : vector<4x1xf32>
    %18 = vector.broadcast %10 : vector<4x1xf32> to vector<4x512xf32>
    %19 = arith.subf %4, %18 : vector<4x512xf32>
    %20 = vector.broadcast %5 : vector<4x1xf32> to vector<4x512xf32>
    %21 = arith.mulf %20, %19 : vector<4x512xf32>
    %cst_14 = arith.constant 9.99999974E-6 : f32
    %22 = vector.broadcast %cst_14 : f32 to vector<4x1xf32>
    %23 = arith.addf %17, %22 : vector<4x1xf32>
    %24 = math.rsqrt %23 : vector<4x1xf32>
    %25 = vector.broadcast %24 : vector<4x1xf32> to vector<4x512xf32>
    %26 = arith.mulf %21, %25 : vector<4x512xf32>
    %27 = vector.broadcast %6 : vector<4x1xf32> to vector<4x512xf32>
    %28 = arith.addf %26, %27 : vector<4x512xf32>
    %cst_15 = arith.constant 0.000000e+00 : f32
    %29 = vector.broadcast %cst_15 : f32 to vector<4x512xf32>
    %30 = arith.maximumf %28, %29 : vector<4x512xf32>
    %cst_16 = arith.constant 0.000000e+00 : f32
    %31 = vector.broadcast %cst_16 : f32 to vector<4x546xf32>
    %c0_17 = arith.constant 0 : index
    %c0_18 = arith.constant 0 : index
    %32 = vector.load %arg13[%c0_17, %c0_18] : memref<4x546xf32, #tpu.memory_space<vmem>>, vector<4x546xf32>
    tpu.vector_store %arg13[%c0_17, %c0_18], %31 {strides = array<i32>} : memref<4x546xf32, #tpu.memory_space<vmem>>, vector<4x546xf32>,
    %c0_19 = arith.constant 0 : index
    %c17 = arith.constant 17 : index
    %33 = vector.load %arg13[%c0_19, %c17] : memref<4x546xf32, #tpu.memory_space<vmem>>, vector<4x512xf32>
    tpu.vector_store %arg13[%c0_19, %c17], %30 {strides = array<i32>} : memref<4x546xf32, #tpu.memory_space<vmem>>, vector<4x512xf32>,
    %c0_20 = arith.constant 0 : index
    %c0_21 = arith.constant 0 : index
    %34 = vector.load %arg6[%c0_20, %c0_21] : memref<4x9xf32, #tpu.memory_space<vmem>>, vector<4x9xf32>
    %c0_22 = arith.constant 0 : index
    %c0_23 = arith.constant 0 : index
    %35 = vector.load %arg13[%c0_22, %c0_23] : memref<4x546xf32, #tpu.memory_space<vmem>>, vector<4x512xf32>
    %c1_i32 = arith.constant 1 : i32
    %36 = vector.broadcast %c1_i32 : i32 to vector<1x512xi32>
    %37 = arith.cmpi sge, %0, %36 : vector<1x512xi32>
    %c17_i32 = arith.constant 17 : i32
    %38 = vector.broadcast %c17_i32 : i32 to vector<1x512xi32>
    %39 = arith.cmpi slt, %0, %38 : vector<1x512xi32>
    %40 = arith.andi %37, %39 : vector<1x512xi1>
    %c1_i32_24 = arith.constant 1 : i32
    %41 = vector.broadcast %c1_i32_24 : i32 to vector<1x512xi32>
    %42 = arith.cmpi sge, %1, %41 : vector<1x512xi32>
    %43 = arith.andi %40, %42 : vector<1x512xi1>
    %c17_i32_25 = arith.constant 17 : i32
    %44 = vector.broadcast %c17_i32_25 : i32 to vector<1x512xi32>
    %45 = arith.cmpi slt, %1, %44 : vector<1x512xi32>
    %46 = arith.andi %43, %45 : vector<1x512xi1>
    %cst_26 = arith.constant 0.000000e+00 : f32
    %47 = vector.shape_cast %46 : vector<1x512xi1> to vector<1x512xi1>
    %48 = vector.broadcast %47 : vector<1x512xi1> to vector<4x512xi1>
    %49 = vector.broadcast %cst_26 : f32 to vector<4x512xf32>
    %50 = arith.select %48, %35, %49 : vector<4x512xi1>, vector<4x512xf32>
    %51 = vector.extract_strided_slice %34 {offsets = [0, 0], sizes = [4, 1], strides = [1, 1]} : vector<4x9xf32> to vector<4x1xf32>
    %52 = vector.broadcast %51 : vector<4x1xf32> to vector<4x512xf32>
    %53 = arith.mulf %50, %52 : vector<4x512xf32>
    %c0_27 = arith.constant 0 : index
    %c1_28 = arith.constant 1 : index
    %54 = vector.load %arg13[%c0_27, %c1_28] : memref<4x546xf32, #tpu.memory_space<vmem>>, vector<4x512xf32>
    %c1_i32_29 = arith.constant 1 : i32
    %55 = vector.broadcast %c1_i32_29 : i32 to vector<1x512xi32>
    %56 = arith.cmpi sge, %0, %55 : vector<1x512xi32>
    %c17_i32_30 = arith.constant 17 : i32
    %57 = vector.broadcast %c17_i32_30 : i32 to vector<1x512xi32>
    %58 = arith.cmpi slt, %0, %57 : vector<1x512xi32>
    %59 = arith.andi %56, %58 : vector<1x512xi1>
    %c0_i32 = arith.constant 0 : i32
    %60 = vector.broadcast %c0_i32 : i32 to vector<1x512xi32>
    %61 = arith.cmpi sge, %1, %60 : vector<1x512xi32>
    %62 = arith.andi %59, %61 : vector<1x512xi1>
    %c16_i32 = arith.constant 16 : i32
    %63 = vector.broadcast %c16_i32 : i32 to vector<1x512xi32>
    %64 = arith.cmpi slt, %1, %63 : vector<1x512xi32>
    %65 = arith.andi %62, %64 : vector<1x512xi1>
    %cst_31 = arith.constant 0.000000e+00 : f32
    %66 = vector.shape_cast %65 : vector<1x512xi1> to vector<1x512xi1>
    %67 = vector.broadcast %66 : vector<1x512xi1> to vector<4x512xi1>
    %68 = vector.broadcast %cst_31 : f32 to vector<4x512xf32>
    %69 = arith.select %67, %54, %68 : vector<4x512xi1>, vector<4x512xf32>
    %70 = vector.extract_strided_slice %34 {offsets = [0, 1], sizes = [4, 1], strides = [1, 1]} : vector<4x9xf32> to vector<4x1xf32>
    %71 = vector.broadcast %70 : vector<4x1xf32> to vector<4x512xf32>
    %72 = arith.mulf %69, %71 : vector<4x512xf32>
    %73 = arith.addf %53, %72 : vector<4x512xf32>
    %c0_32 = arith.constant 0 : index
    %c2 = arith.constant 2 : index
    %74 = vector.load %arg13[%c0_32, %c2] : memref<4x546xf32, #tpu.memory_space<vmem>>, vector<4x512xf32>
    %c1_i32_33 = arith.constant 1 : i32
    %75 = vector.broadcast %c1_i32_33 : i32 to vector<1x512xi32>
    %76 = arith.cmpi sge, %0, %75 : vector<1x512xi32>
    %c17_i32_34 = arith.constant 17 : i32
    %77 = vector.broadcast %c17_i32_34 : i32 to vector<1x512xi32>
    %78 = arith.cmpi slt, %0, %77 : vector<1x512xi32>
    %79 = arith.andi %76, %78 : vector<1x512xi1>
    %c-1_i32 = arith.constant -1 : i32
    %80 = vector.broadcast %c-1_i32 : i32 to vector<1x512xi32>
    %81 = arith.cmpi sge, %1, %80 : vector<1x512xi32>
    %82 = arith.andi %79, %81 : vector<1x512xi1>
    %c15_i32 = arith.constant 15 : i32
    %83 = vector.broadcast %c15_i32 : i32 to vector<1x512xi32>
    %84 = arith.cmpi slt, %1, %83 : vector<1x512xi32>
    %85 = arith.andi %82, %84 : vector<1x512xi1>
    %cst_35 = arith.constant 0.000000e+00 : f32
    %86 = vector.shape_cast %85 : vector<1x512xi1> to vector<1x512xi1>
    %87 = vector.broadcast %86 : vector<1x512xi1> to vector<4x512xi1>
    %88 = vector.broadcast %cst_35 : f32 to vector<4x512xf32>
    %89 = arith.select %87, %74, %88 : vector<4x512xi1>, vector<4x512xf32>
    %90 = vector.extract_strided_slice %34 {offsets = [0, 2], sizes = [4, 1], strides = [1, 1]} : vector<4x9xf32> to vector<4x1xf32>
    %91 = vector.broadcast %90 : vector<4x1xf32> to vector<4x512xf32>
    %92 = arith.mulf %89, %91 : vector<4x512xf32>
    %93 = arith.addf %73, %92 : vector<4x512xf32>
    %c0_36 = arith.constant 0 : index
    %c16 = arith.constant 16 : index
    %94 = vector.load %arg13[%c0_36, %c16] : memref<4x546xf32, #tpu.memory_space<vmem>>, vector<4x512xf32>
    %c0_i32_37 = arith.constant 0 : i32
    %95 = vector.broadcast %c0_i32_37 : i32 to vector<1x512xi32>
    %96 = arith.cmpi sge, %0, %95 : vector<1x512xi32>
    %c16_i32_38 = arith.constant 16 : i32
    %97 = vector.broadcast %c16_i32_38 : i32 to vector<1x512xi32>
    %98 = arith.cmpi slt, %0, %97 : vector<1x512xi32>
    %99 = arith.andi %96, %98 : vector<1x512xi1>
    %c1_i32_39 = arith.constant 1 : i32
    %100 = vector.broadcast %c1_i32_39 : i32 to vector<1x512xi32>
    %101 = arith.cmpi sge, %1, %100 : vector<1x512xi32>
    %102 = arith.andi %99, %101 : vector<1x512xi1>
    %c17_i32_40 = arith.constant 17 : i32
    %103 = vector.broadcast %c17_i32_40 : i32 to vector<1x512xi32>
    %104 = arith.cmpi slt, %1, %103 : vector<1x512xi32>
    %105 = arith.andi %102, %104 : vector<1x512xi1>
    %cst_41 = arith.constant 0.000000e+00 : f32
    %106 = vector.shape_cast %105 : vector<1x512xi1> to vector<1x512xi1>
    %107 = vector.broadcast %106 : vector<1x512xi1> to vector<4x512xi1>
    %108 = vector.broadcast %cst_41 : f32 to vector<4x512xf32>
    %109 = arith.select %107, %94, %108 : vector<4x512xi1>, vector<4x512xf32>
    %110 = vector.extract_strided_slice %34 {offsets = [0, 3], sizes = [4, 1], strides = [1, 1]} : vector<4x9xf32> to vector<4x1xf32>
    %111 = vector.broadcast %110 : vector<4x1xf32> to vector<4x512xf32>
    %112 = arith.mulf %109, %111 : vector<4x512xf32>
    %113 = arith.addf %93, %112 : vector<4x512xf32>
    %c0_42 = arith.constant 0 : index
    %c17_43 = arith.constant 17 : index
    %114 = vector.load %arg13[%c0_42, %c17_43] : memref<4x546xf32, #tpu.memory_space<vmem>>, vector<4x512xf32>
    %115 = vector.extract_strided_slice %34 {offsets = [0, 4], sizes = [4, 1], strides = [1, 1]} : vector<4x9xf32> to vector<4x1xf32>
    %116 = vector.broadcast %115 : vector<4x1xf32> to vector<4x512xf32>
    %117 = arith.mulf %114, %116 : vector<4x512xf32>
    %118 = arith.addf %113, %117 : vector<4x512xf32>
    %c0_44 = arith.constant 0 : index
    %c18 = arith.constant 18 : index
    %119 = vector.load %arg13[%c0_44, %c18] : memref<4x546xf32, #tpu.memory_space<vmem>>, vector<4x512xf32>
    %c0_i32_45 = arith.constant 0 : i32
    %120 = vector.broadcast %c0_i32_45 : i32 to vector<1x512xi32>
    %121 = arith.cmpi sge, %0, %120 : vector<1x512xi32>
    %c16_i32_46 = arith.constant 16 : i32
    %122 = vector.broadcast %c16_i32_46 : i32 to vector<1x512xi32>
    %123 = arith.cmpi slt, %0, %122 : vector<1x512xi32>
    %124 = arith.andi %121, %123 : vector<1x512xi1>
    %c-1_i32_47 = arith.constant -1 : i32
    %125 = vector.broadcast %c-1_i32_47 : i32 to vector<1x512xi32>
    %126 = arith.cmpi sge, %1, %125 : vector<1x512xi32>
    %127 = arith.andi %124, %126 : vector<1x512xi1>
    %c15_i32_48 = arith.constant 15 : i32
    %128 = vector.broadcast %c15_i32_48 : i32 to vector<1x512xi32>
    %129 = arith.cmpi slt, %1, %128 : vector<1x512xi32>
    %130 = arith.andi %127, %129 : vector<1x512xi1>
    %cst_49 = arith.constant 0.000000e+00 : f32
    %131 = vector.shape_cast %130 : vector<1x512xi1> to vector<1x512xi1>
    %132 = vector.broadcast %131 : vector<1x512xi1> to vector<4x512xi1>
    %133 = vector.broadcast %cst_49 : f32 to vector<4x512xf32>
    %134 = arith.select %132, %119, %133 : vector<4x512xi1>, vector<4x512xf32>
    %135 = vector.extract_strided_slice %34 {offsets = [0, 5], sizes = [4, 1], strides = [1, 1]} : vector<4x9xf32> to vector<4x1xf32>
    %136 = vector.broadcast %135 : vector<4x1xf32> to vector<4x512xf32>
    %137 = arith.mulf %134, %136 : vector<4x512xf32>
    %138 = arith.addf %118, %137 : vector<4x512xf32>
    %c0_50 = arith.constant 0 : index
    %c32 = arith.constant 32 : index
    %139 = vector.load %arg13[%c0_50, %c32] : memref<4x546xf32, #tpu.memory_space<vmem>>, vector<4x512xf32>
    %c-1_i32_51 = arith.constant -1 : i32
    %140 = vector.broadcast %c-1_i32_51 : i32 to vector<1x512xi32>
    %141 = arith.cmpi sge, %0, %140 : vector<1x512xi32>
    %c15_i32_52 = arith.constant 15 : i32
    %142 = vector.broadcast %c15_i32_52 : i32 to vector<1x512xi32>
    %143 = arith.cmpi slt, %0, %142 : vector<1x512xi32>
    %144 = arith.andi %141, %143 : vector<1x512xi1>
    %c1_i32_53 = arith.constant 1 : i32
    %145 = vector.broadcast %c1_i32_53 : i32 to vector<1x512xi32>
    %146 = arith.cmpi sge, %1, %145 : vector<1x512xi32>
    %147 = arith.andi %144, %146 : vector<1x512xi1>
    %c17_i32_54 = arith.constant 17 : i32
    %148 = vector.broadcast %c17_i32_54 : i32 to vector<1x512xi32>
    %149 = arith.cmpi slt, %1, %148 : vector<1x512xi32>
    %150 = arith.andi %147, %149 : vector<1x512xi1>
    %cst_55 = arith.constant 0.000000e+00 : f32
    %151 = vector.shape_cast %150 : vector<1x512xi1> to vector<1x512xi1>
    %152 = vector.broadcast %151 : vector<1x512xi1> to vector<4x512xi1>
    %153 = vector.broadcast %cst_55 : f32 to vector<4x512xf32>
    %154 = arith.select %152, %139, %153 : vector<4x512xi1>, vector<4x512xf32>
    %155 = vector.extract_strided_slice %34 {offsets = [0, 6], sizes = [4, 1], strides = [1, 1]} : vector<4x9xf32> to vector<4x1xf32>
    %156 = vector.broadcast %155 : vector<4x1xf32> to vector<4x512xf32>
    %157 = arith.mulf %154, %156 : vector<4x512xf32>
    %158 = arith.addf %138, %157 : vector<4x512xf32>
    %c0_56 = arith.constant 0 : index
    %c33 = arith.constant 33 : index
    %159 = vector.load %arg13[%c0_56, %c33] : memref<4x546xf32, #tpu.memory_space<vmem>>, vector<4x512xf32>
    %c-1_i32_57 = arith.constant -1 : i32
    %160 = vector.broadcast %c-1_i32_57 : i32 to vector<1x512xi32>
    %161 = arith.cmpi sge, %0, %160 : vector<1x512xi32>
    %c15_i32_58 = arith.constant 15 : i32
    %162 = vector.broadcast %c15_i32_58 : i32 to vector<1x512xi32>
    %163 = arith.cmpi slt, %0, %162 : vector<1x512xi32>
    %164 = arith.andi %161, %163 : vector<1x512xi1>
    %c0_i32_59 = arith.constant 0 : i32
    %165 = vector.broadcast %c0_i32_59 : i32 to vector<1x512xi32>
    %166 = arith.cmpi sge, %1, %165 : vector<1x512xi32>
    %167 = arith.andi %164, %166 : vector<1x512xi1>
    %c16_i32_60 = arith.constant 16 : i32
    %168 = vector.broadcast %c16_i32_60 : i32 to vector<1x512xi32>
    %169 = arith.cmpi slt, %1, %168 : vector<1x512xi32>
    %170 = arith.andi %167, %169 : vector<1x512xi1>
    %cst_61 = arith.constant 0.000000e+00 : f32
    %171 = vector.shape_cast %170 : vector<1x512xi1> to vector<1x512xi1>
    %172 = vector.broadcast %171 : vector<1x512xi1> to vector<4x512xi1>
    %173 = vector.broadcast %cst_61 : f32 to vector<4x512xf32>
    %174 = arith.select %172, %159, %173 : vector<4x512xi1>, vector<4x512xf32>
    %175 = vector.extract_strided_slice %34 {offsets = [0, 7], sizes = [4, 1], strides = [1, 1]} : vector<4x9xf32> to vector<4x1xf32>
    %176 = vector.broadcast %175 : vector<4x1xf32> to vector<4x512xf32>
    %177 = arith.mulf %174, %176 : vector<4x512xf32>
    %178 = arith.addf %158, %177 : vector<4x512xf32>
    %c0_62 = arith.constant 0 : index
    %c34 = arith.constant 34 : index
    %179 = vector.load %arg13[%c0_62, %c34] : memref<4x546xf32, #tpu.memory_space<vmem>>, vector<4x512xf32>
    %c-1_i32_63 = arith.constant -1 : i32
    %180 = vector.broadcast %c-1_i32_63 : i32 to vector<1x512xi32>
    %181 = arith.cmpi sge, %0, %180 : vector<1x512xi32>
    %c15_i32_64 = arith.constant 15 : i32
    %182 = vector.broadcast %c15_i32_64 : i32 to vector<1x512xi32>
    %183 = arith.cmpi slt, %0, %182 : vector<1x512xi32>
    %184 = arith.andi %181, %183 : vector<1x512xi1>
    %c-1_i32_65 = arith.constant -1 : i32
    %185 = vector.broadcast %c-1_i32_65 : i32 to vector<1x512xi32>
    %186 = arith.cmpi sge, %1, %185 : vector<1x512xi32>
    %187 = arith.andi %184, %186 : vector<1x512xi1>
    %c15_i32_66 = arith.constant 15 : i32
    %188 = vector.broadcast %c15_i32_66 : i32 to vector<1x512xi32>
    %189 = arith.cmpi slt, %1, %188 : vector<1x512xi32>
    %190 = arith.andi %187, %189 : vector<1x512xi1>
    %cst_67 = arith.constant 0.000000e+00 : f32
    %191 = vector.shape_cast %190 : vector<1x512xi1> to vector<1x512xi1>
    %192 = vector.broadcast %191 : vector<1x512xi1> to vector<4x512xi1>
    %193 = vector.broadcast %cst_67 : f32 to vector<4x512xf32>
    %194 = arith.select %192, %179, %193 : vector<4x512xi1>, vector<4x512xf32>
    %195 = vector.extract_strided_slice %34 {offsets = [0, 8], sizes = [4, 1], strides = [1, 1]} : vector<4x9xf32> to vector<4x1xf32>
    %196 = vector.broadcast %195 : vector<4x1xf32> to vector<4x512xf32>
    %197 = arith.mulf %194, %196 : vector<4x512xf32>
    %198 = arith.addf %178, %197 : vector<4x512xf32>
    %c0_68 = arith.constant 0 : index
    %c0_69 = arith.constant 0 : index
    %199 = vector.load %arg7[%c0_68, %c0_69] : memref<4x1xf32, #tpu.memory_space<vmem>>, vector<4x1xf32>
    %c0_70 = arith.constant 0 : index
    %c0_71 = arith.constant 0 : index
    %200 = vector.load %arg8[%c0_70, %c0_71] : memref<4x1xf32, #tpu.memory_space<vmem>>, vector<4x1xf32>
    %cst_72 = arith.constant dense<0.000000e+00> : vector<4xf32>
    %201 = vector.multi_reduction <add>, %198, %cst_72 [1] : vector<4x512xf32> to vector<4xf32>
    %202 = vector.shape_cast %201 : vector<4xf32> to vector<4x1xf32>
    %cst_73 = arith.constant 0.001953125 : f32
    %203 = vector.broadcast %cst_73 : f32 to vector<4x1xf32>
    %204 = arith.mulf %202, %203 : vector<4x1xf32>
    %205 = arith.mulf %198, %198 : vector<4x512xf32>
    %cst_74 = arith.constant dense<0.000000e+00> : vector<4xf32>
    %206 = vector.multi_reduction <add>, %205, %cst_74 [1] : vector<4x512xf32> to vector<4xf32>
    %207 = vector.shape_cast %206 : vector<4xf32> to vector<4x1xf32>
    %cst_75 = arith.constant 0.001953125 : f32
    %208 = vector.broadcast %cst_75 : f32 to vector<4x1xf32>
    %209 = arith.mulf %207, %208 : vector<4x1xf32>
    %210 = arith.mulf %204, %204 : vector<4x1xf32>
    %211 = arith.subf %209, %210 : vector<4x1xf32>
    %212 = vector.broadcast %204 : vector<4x1xf32> to vector<4x512xf32>
    %213 = arith.subf %198, %212 : vector<4x512xf32>
    %214 = vector.broadcast %199 : vector<4x1xf32> to vector<4x512xf32>
    %215 = arith.mulf %214, %213 : vector<4x512xf32>
    %cst_76 = arith.constant 9.99999974E-6 : f32
    %216 = vector.broadcast %cst_76 : f32 to vector<4x1xf32>
    %217 = arith.addf %211, %216 : vector<4x1xf32>
    %218 = math.rsqrt %217 : vector<4x1xf32>
    %219 = vector.broadcast %218 : vector<4x1xf32> to vector<4x512xf32>
    %220 = arith.mulf %215, %219 : vector<4x512xf32>
    %221 = vector.broadcast %200 : vector<4x1xf32> to vector<4x512xf32>
    %222 = arith.addf %220, %221 : vector<4x512xf32>
    %c0_77 = arith.constant 0 : index
    %c0_78 = arith.constant 0 : index
    %223 = vector.load %arg9[%c0_77, %c0_78] : memref<16x4xf32, #tpu.memory_space<vmem>>, vector<16x4xf32>
    %cst_79 = arith.constant dense<0.000000e+00> : vector<16x512xf32>
    %224 = tpu.matmul %223, %222, %cst_79 {dimension_numbers = #tpu.dot_dimension_numbers<[1], [0], [0], [1], [0, 0, 1, 1], [], []>} : vector<16x4xf32>, vector<4x512xf32>, vector<16x512xf32> -> vector<16x512xf32>
    %c0_80 = arith.constant 0 : index
    %c0_81 = arith.constant 0 : index
    %225 = vector.load %arg10[%c0_80, %c0_81] : memref<16x1xf32, #tpu.memory_space<vmem>>, vector<16x1xf32>
    %c0_82 = arith.constant 0 : index
    %c0_83 = arith.constant 0 : index
    %226 = vector.load %arg11[%c0_82, %c0_83] : memref<16x1xf32, #tpu.memory_space<vmem>>, vector<16x1xf32>
    %cst_84 = arith.constant dense<0.000000e+00> : vector<16xf32>
    %227 = vector.multi_reduction <add>, %224, %cst_84 [1] : vector<16x512xf32> to vector<16xf32>
    %228 = vector.shape_cast %227 : vector<16xf32> to vector<16x1xf32>
    %cst_85 = arith.constant 0.001953125 : f32
    %229 = vector.broadcast %cst_85 : f32 to vector<16x1xf32>
    %230 = arith.mulf %228, %229 : vector<16x1xf32>
    %231 = arith.mulf %224, %224 : vector<16x512xf32>
    %cst_86 = arith.constant dense<0.000000e+00> : vector<16xf32>
    %232 = vector.multi_reduction <add>, %231, %cst_86 [1] : vector<16x512xf32> to vector<16xf32>
    %233 = vector.shape_cast %232 : vector<16xf32> to vector<16x1xf32>
    %cst_87 = arith.constant 0.001953125 : f32
    %234 = vector.broadcast %cst_87 : f32 to vector<16x1xf32>
    %235 = arith.mulf %233, %234 : vector<16x1xf32>
    %236 = arith.mulf %230, %230 : vector<16x1xf32>
    %237 = arith.subf %235, %236 : vector<16x1xf32>
    %238 = vector.broadcast %230 : vector<16x1xf32> to vector<16x512xf32>
    %239 = arith.subf %224, %238 : vector<16x512xf32>
    %240 = vector.broadcast %225 : vector<16x1xf32> to vector<16x512xf32>
    %241 = arith.mulf %240, %239 : vector<16x512xf32>
    %cst_88 = arith.constant 9.99999974E-6 : f32
    %242 = vector.broadcast %cst_88 : f32 to vector<16x1xf32>
    %243 = arith.addf %237, %242 : vector<16x1xf32>
    %244 = math.rsqrt %243 : vector<16x1xf32>
    %245 = vector.broadcast %244 : vector<16x1xf32> to vector<16x512xf32>
    %246 = arith.mulf %241, %245 : vector<16x512xf32>
    %247 = vector.broadcast %226 : vector<16x1xf32> to vector<16x512xf32>
    %248 = arith.addf %246, %247 : vector<16x512xf32>
    %249 = arith.addf %248, %2 : vector<16x512xf32>
    %cst_89 = arith.constant 0.000000e+00 : f32
    %250 = vector.broadcast %cst_89 : f32 to vector<16x512xf32>
    %251 = arith.maximumf %249, %250 : vector<16x512xf32>
    %c0_90 = arith.constant 0 : index
    %c0_91 = arith.constant 0 : index
    %252 = vector.load %arg12[%c0_90, %c0_91] : memref<16x512xf32, #tpu.memory_space<vmem>>, vector<16x512xf32>
    tpu.vector_store %arg12[%c0_90, %c0_91], %251 {strides = array<i32>} : memref<16x512xf32, #tpu.memory_space<vmem>>, vector<16x512xf32>,
    return
  }
  func.func @transform_0(%arg0: i32) -> (i32, i32) {
    %c0_i32 = arith.constant 0 : i32
    %c0_i32_0 = arith.constant 0 : i32
    %c0_i32_1 = arith.constant 0 : i32
    return %c0_i32, %c0_i32_0 : i32, i32
  }
  func.func @transform_1(%arg0: i32) -> (i32, i32) {
    %c0_i32 = arith.constant 0 : i32
    %c0_i32_0 = arith.constant 0 : i32
    %c0_i32_1 = arith.constant 0 : i32
    return %c0_i32, %c0_i32_0 : i32, i32
  }
  func.func @transform_2(%arg0: i32) -> (i32, i32) {
    %c0_i32 = arith.constant 0 : i32
    %c0_i32_0 = arith.constant 0 : i32
    %c0_i32_1 = arith.constant 0 : i32
    return %c0_i32, %c0_i32_0 : i32, i32
  }
  func.func @transform_3(%arg0: i32) -> (i32, i32) {
    %c0_i32 = arith.constant 0 : i32
    %c0_i32_0 = arith.constant 0 : i32
    %c0_i32_1 = arith.constant 0 : i32
    return %c0_i32, %c0_i32_0 : i32, i32
  }
  func.func @transform_4(%arg0: i32) -> (i32, i32) {
    %c0_i32 = arith.constant 0 : i32
    %c0_i32_0 = arith.constant 0 : i32
    %c0_i32_1 = arith.constant 0 : i32
    return %c0_i32, %c0_i32_0 : i32, i32
  }
  func.func @transform_5(%arg0: i32) -> (i32, i32) {
    %c0_i32 = arith.constant 0 : i32
    %c0_i32_0 = arith.constant 0 : i32
    %c0_i32_1 = arith.constant 0 : i32
    return %c0_i32, %c0_i32_0 : i32, i32
  }
  func.func @transform_6(%arg0: i32) -> (i32, i32) {
    %c0_i32 = arith.constant 0 : i32
    %c0_i32_0 = arith.constant 0 : i32
    %c0_i32_1 = arith.constant 0 : i32
    return %c0_i32, %c0_i32_0 : i32, i32
  }
  func.func @transform_7(%arg0: i32) -> (i32, i32) {
    %c0_i32 = arith.constant 0 : i32
    %c0_i32_0 = arith.constant 0 : i32
    %c0_i32_1 = arith.constant 0 : i32
    return %c0_i32, %c0_i32_0 : i32, i32
  }
  func.func @transform_8(%arg0: i32) -> (i32, i32) {
    %c0_i32 = arith.constant 0 : i32
    %c0_i32_0 = arith.constant 0 : i32
    %c0_i32_1 = arith.constant 0 : i32
    return %c0_i32, %c0_i32_0 : i32, i32
  }
  func.func @transform_9(%arg0: i32) -> (i32, i32) {
    %c0_i32 = arith.constant 0 : i32
    %c0_i32_0 = arith.constant 0 : i32
    %c0_i32_1 = arith.constant 0 : i32
    return %c0_i32, %c0_i32_0 : i32, i32
  }
  func.func @transform_10(%arg0: i32) -> (i32, i32) {
    %c0_i32 = arith.constant 0 : i32
    %c0_i32_0 = arith.constant 0 : i32
    %c0_i32_1 = arith.constant 0 : i32
    return %c0_i32, %c0_i32_0 : i32, i32
  }
  func.func @transform_11(%arg0: i32) -> (i32, i32) {
    %c0_i32 = arith.constant 0 : i32
    %c0_i32_0 = arith.constant 0 : i32
    %c0_i32_1 = arith.constant 0 : i32
    return %c0_i32, %c0_i32_0 : i32, i32
  }
}

</mosaic_0001>

<llo_original>
// kernel: shufflenet_unit_forward.1
$region0: #{shufflenet_unit_forward.1}
  #allocation0 [shape = 'u32[]', space=smem, size = 0x4, offset = 0x4, fixed_abs, tag = 'smem constant byte address 0x4 - core index']
  #allocation1 [shape = 'u32[72,128]{1,0:T(1,128)}', space=vmem, size = 0x9000, scoped, tag = 'internal scratch']
  #allocation2 [shape = 'f32[4,546]{1,0:T(4,128)}', space=vmem, size = 0x2800, scoped, tag = 'scratch operand']
  %s0 = inlined_call_operand.vmem [shape: f32[16,512], index: 0, kind: input, shape index: {}]
  %s1 = inlined_call_operand.vmem [shape: s32[2,512], index: 1, kind: input, shape index: {}]
  %s2 = inlined_call_operand.vmem [shape: f32[4,16], index: 2, kind: input, shape index: {}]
  %s3 = inlined_call_operand.vmem [shape: f32[4,1], index: 3, kind: input, shape index: {}]
  %s4 = inlined_call_operand.vmem [shape: f32[4,1], index: 4, kind: input, shape index: {}]
  %s5 = inlined_call_operand.vmem [shape: f32[4,9], index: 5, kind: input, shape index: {}]
  %s6 = inlined_call_operand.vmem [shape: f32[4,1], index: 6, kind: input, shape index: {}]
  %s7 = inlined_call_operand.vmem [shape: f32[4,1], index: 7, kind: input, shape index: {}]
  %s8 = inlined_call_operand.vmem [shape: f32[16,4], index: 8, kind: input, shape index: {}]
  %s9 = inlined_call_operand.vmem [shape: f32[16,1], index: 9, kind: input, shape index: {}]
  %s10 = inlined_call_operand.vmem [shape: f32[16,1], index: 10, kind: input, shape index: {}]
  %s11 = inlined_call_operand.vmem [shape: f32[16,512], index: 11, kind: output, shape index: {}]
  %s12 = sld [smem:[#allocation0]]
  $region54: #{shufflenet_unit_forward.1} parent=0
    _
  %s14 = ssub.s32 1, %s12
  %s15 = scalar_select 0, %s14, %s12
  // Predicated region
  $region2: #{shufflenet_unit_forward.1} parent=0 // pred_check
    _
  $region3: #{shufflenet_unit_forward.1} parent=0 // pred_check_branch
    %17 = sbr.rel (0) target = $region5
  $region4: #{shufflenet_unit_forward.1} parent=0 // pred_region
    _
  $region5: #{shufflenet_unit_forward.1} parent=0 // pred_fallthru
    _
  // Predicated region
  $region6: #{shufflenet_unit_forward.1} parent=0 // pred_check
    _
  $region7: #{shufflenet_unit_forward.1} parent=0 // pred_check_branch
    %19 = sbr.rel (0) target = $region9
  $region8: #{shufflenet_unit_forward.1} parent=0 // pred_region
    _
  $region9: #{shufflenet_unit_forward.1} parent=0 // pred_fallthru
    _
  // Predicated region
  $region10: #{shufflenet_unit_forward.1} parent=0 // pred_check
    _
  $region11: #{shufflenet_unit_forward.1} parent=0 // pred_check_branch
    %21 = sbr.rel (0) target = $region13
  $region12: #{shufflenet_unit_forward.1} parent=0 // pred_region
    _
  $region13: #{shufflenet_unit_forward.1} parent=0 // pred_fallthru
    _
  // Predicated region
  $region14: #{shufflenet_unit_forward.1} parent=0 // pred_check
    _
  $region15: #{shufflenet_unit_forward.1} parent=0 // pred_check_branch
    %23 = sbr.rel (0) target = $region17
  $region16: #{shufflenet_unit_forward.1} parent=0 // pred_region
    _
  $region17: #{shufflenet_unit_forward.1} parent=0 // pred_fallthru
    _
  // Predicated region
  $region18: #{shufflenet_unit_forward.1} parent=0 // pred_check
    _
  $region19: #{shufflenet_unit_forward.1} parent=0 // pred_check_branch
    %25 = sbr.rel (0) target = $region21
  $region20: #{shufflenet_unit_forward.1} parent=0 // pred_region
    _
  $region21: #{shufflenet_unit_forward.1} parent=0 // pred_fallthru
    _
  // Predicated region
  $region22: #{shufflenet_unit_forward.1} parent=0 // pred_check
    _
  $region23: #{shufflenet_unit_forward.1} parent=0 // pred_check_branch
    %27 = sbr.rel (0) target = $region25
  $region24: #{shufflenet_unit_forward.1} parent=0 // pred_region
    _
  $region25: #{shufflenet_unit_forward.1} parent=0 // pred_fallthru
    _
  // Predicated region
  $region26: #{shufflenet_unit_forward.1} parent=0 // pred_check
    _
  $region27: #{shufflenet_unit_forward.1} parent=0 // pred_check_branch
    %29 = sbr.rel (0) target = $region29
  $region28: #{shufflenet_unit_forward.1} parent=0 // pred_region
    _
  $region29: #{shufflenet_unit_forward.1} parent=0 // pred_fallthru
    _
  // Predicated region
  $region30: #{shufflenet_unit_forward.1} parent=0 // pred_check
    _
  $region31: #{shufflenet_unit_forward.1} parent=0 // pred_check_branch
    %31 = sbr.rel (0) target = $region33
  $region32: #{shufflenet_unit_forward.1} parent=0 // pred_region
    _
  $region33: #{shufflenet_unit_forward.1} parent=0 // pred_fallthru
    _
  // Predicated region
  $region34: #{shufflenet_unit_forward.1} parent=0 // pred_check
    _
  $region35: #{shufflenet_unit_forward.1} parent=0 // pred_check_branch
    %33 = sbr.rel (0) target = $region37
  $region36: #{shufflenet_unit_forward.1} parent=0 // pred_region
    _
  $region37: #{shufflenet_unit_forward.1} parent=0 // pred_fallthru
    _
  // Predicated region
  $region38: #{shufflenet_unit_forward.1} parent=0 // pred_check
    _
  $region39: #{shufflenet_unit_forward.1} parent=0 // pred_check_branch
    %35 = sbr.rel (0) target = $region41
  $region40: #{shufflenet_unit_forward.1} parent=0 // pred_region
    _
  $region41: #{shufflenet_unit_forward.1} parent=0 // pred_fallthru
    _
  // Predicated region
  $region42: #{shufflenet_unit_forward.1} parent=0 // pred_check
    _
  $region43: #{shufflenet_unit_forward.1} parent=0 // pred_check_branch
    %37 = sbr.rel (0) target = $region45
  $region44: #{shufflenet_unit_forward.1} parent=0 // pred_region
    _
  $region45: #{shufflenet_unit_forward.1} parent=0 // pred_fallthru
    _
  %v38 = vld [vmem:[%s1] ss:$2 sm:$0xf]
  %s39 = scalar_lea.vmem %s1, 1
  %v40 = vld [vmem:[%s39] ss:$2 sm:$0xf]
  %v41 = vld [vmem:[%s0] sm:$0xff]
  %v42 = vld [vmem:[%s0 + $0x8] sm:$0xff]
  %v43 = vld [vmem:[%s0 + $0x10] sm:$0xff]
  %v44 = vld [vmem:[%s0 + $0x18] sm:$0xff]
  %v45 = vld [vmem:[%s0 + $0x20] sm:$0xff]
  %v46 = vld [vmem:[%s0 + $0x28] sm:$0xff]
  %v47 = vld [vmem:[%s0 + $0x30] sm:$0xff]
  %v48 = vld [vmem:[%s0 + $0x38] sm:$0xff]
  %v49 = vld [vmem:[%s2] sm:$0xf]
  %vm50 = vcmask 130048
  %v52 = vsel %vm50, %v49, 0
  %54 = vmatpush.msra.mxu0 0.0
  %55 = vmatpush.msra.mxu0 0.0
  %56 = vmatpush.msra.mxu0 0.0
  %57 = vmatpush.msra.mxu0 0.0
  %58 = vmatpush.msra.mxu0 0.0
  %59 = vmatpush.msra.mxu0 0.0
  %60 = vmatpush.msra.mxu0 0.0
  %61 = vmatpush.msra.mxu0 0.0
  %62 = vmatpush.msra.mxu0 0.0
  %63 = vmatpush.msra.mxu0 0.0
  %64 = vmatpush.msra.mxu0 0.0
  %65 = vmatpush.msra.mxu0 0.0
  %66 = vmatpush.msra.mxu0 0.0
  %67 = vmatpush.msra.mxu0 0.0
  %68 = vmatpush.msra.mxu0 %v45
  %69 = vmatpush.msra.mxu0 %v41
  %70 = vmatmul.f32.gmra.mxu0 %v52
  %v71 = vpop.f32.mrf.mxu0
  %v72 = vadd.f32 0.0, %v71
  %73 = vdwg.mxu0
  %74 = vmatpush.msra.mxu0 0.0
  %75 = vmatpush.msra.mxu0 0.0
  %76 = vmatpush.msra.mxu0 0.0
  %77 = vmatpush.msra.mxu0 0.0
  %78 = vmatpush.msra.mxu0 0.0
  %79 = vmatpush.msra.mxu0 0.0
  %80 = vmatpush.msra.mxu0 0.0
  %81 = vmatpush.msra.mxu0 0.0
  %82 = vmatpush.msra.mxu0 0.0
  %83 = vmatpush.msra.mxu0 0.0
  %84 = vmatpush.msra.mxu0 0.0
  %85 = vmatpush.msra.mxu0 0.0
  %86 = vmatpush.msra.mxu0 0.0
  %87 = vmatpush.msra.mxu0 0.0
  %88 = vmatpush.msra.mxu0 %v46
  %89 = vmatpush.msra.mxu0 %v42
  %90 = vmatmul.f32.gmra.mxu0 %v52
  %v91 = vpop.f32.mrf.mxu0
  %v92 = vadd.f32 0.0, %v91
  %93 = vdwg.mxu0
  %94 = vmatpush.msra.mxu0 0.0
  %95 = vmatpush.msra.mxu0 0.0
  %96 = vmatpush.msra.mxu0 0.0
  %97 = vmatpush.msra.mxu0 0.0
  %98 = vmatpush.msra.mxu0 0.0
  %99 = vmatpush.msra.mxu0 0.0
  %100 = vmatpush.msra.mxu0 0.0
  %101 = vmatpush.msra.mxu0 0.0
  %102 = vmatpush.msra.mxu0 0.0
  %103 = vmatpush.msra.mxu0 0.0
  %104 = vmatpush.msra.mxu0 0.0
  %105 = vmatpush.msra.mxu0 0.0
  %106 = vmatpush.msra.mxu0 0.0
  %107 = vmatpush.msra.mxu0 0.0
  %108 = vmatpush.msra.mxu0 %v47
  %109 = vmatpush.msra.mxu0 %v43
  %110 = vmatmul.f32.gmra.mxu0 %v52
  %v111 = vpop.f32.mrf.mxu0
  %v112 = vadd.f32 0.0, %v111
  %113 = vdwg.mxu0
  %114 = vmatpush.msra.mxu0 0.0
  %115 = vmatpush.msra.mxu0 0.0
  %116 = vmatpush.msra.mxu0 0.0
  %117 = vmatpush.msra.mxu0 0.0
  %118 = vmatpush.msra.mxu0 0.0
  %119 = vmatpush.msra.mxu0 0.0
  %120 = vmatpush.msra.mxu0 0.0
  %121 = vmatpush.msra.mxu0 0.0
  %122 = vmatpush.msra.mxu0 0.0
  %123 = vmatpush.msra.mxu0 0.0
  %124 = vmatpush.msra.mxu0 0.0
  %125 = vmatpush.msra.mxu0 0.0
  %126 = vmatpush.msra.mxu0 0.0
  %127 = vmatpush.msra.mxu0 0.0
  %128 = vmatpush.msra.mxu0 %v48
  %129 = vmatpush.msra.mxu0 %v44
  %130 = vmatmul.f32.gmra.mxu0 %v52
  %v131 = vpop.f32.mrf.mxu0
  %v132 = vadd.f32 0.0, %v131
  %133 = vdwg.mxu0
  %v134 = vld [vmem:[%s3] sm:$0xf]
  %v135 = vld [vmem:[%s4] sm:$0xf]
  %vm136 = vcmask 1043456
  %v137 = vsel %vm136, %v72, 0.0
  %v138 = vsel %vm136, %v92, 0.0
  %v139 = vadd.f32 %v137, %v138
  %v140 = vsel %vm136, %v112, 0.0
  %v141 = vadd.f32 %v139, %v140
  %v142 = vsel %vm136, %v132, 0.0
  %v143 = vadd.f32 %v141, %v142
  %144 = vadd.xlane.f32.xlu0 %v143
  %v145 = vpop.xlane.xlu0 %144
  %v146 = vmul.f32 %v145, 0.001953125
  %v147 = vmul.f32 %v72, %v72
  %v148 = vmul.f32 %v92, %v92
  %v149 = vmul.f32 %v112, %v112
  %v150 = vmul.f32 %v132, %v132
  %v151 = vsel %vm136, %v147, 0.0
  %v152 = vsel %vm136, %v148, 0.0
  %v153 = vadd.f32 %v151, %v152
  %v154 = vsel %vm136, %v149, 0.0
  %v155 = vadd.f32 %v153, %v154
  %v156 = vsel %vm136, %v150, 0.0
  %v157 = vadd.f32 %v155, %v156
  %158 = vadd.xlane.f32.xlu0 %v157
  %v159 = vpop.xlane.xlu0 %158
  %v160 = vmul.f32 %v159, 0.001953125
  %v161 = vmul.f32 %v146, %v146
  %v162 = vsub.f32 %v160, %v161
  %v163 = vsub.f32 %v72, %v146
  %v164 = vsub.f32 %v92, %v146
  %v165 = vsub.f32 %v112, %v146
  %v166 = vsub.f32 %v132, %v146
  %168 = vset.pattern.permute.xlu0 0
  %169 = vperm.xlu0 %168, %v134
  %v170 = vpop.permute.xlu0 %169
  %v172 = vmul.f32 %v170, %v163
  %v173 = vmul.f32 %v170, %v164
  %v174 = vmul.f32 %v170, %v165
  %v175 = vmul.f32 %v170, %v166
  %v176 = vadd.f32 %v162, 1e-05
  %v177 = vrsqrt.pop %v176
  %v178 = vmul.f32 %v177, %v176
  %v179 = vmul.f32 %v178, %v177
  %v180 = vmul.f32 0.5, %v179
  %v181 = vsub.f32 1.5, %v180
  %v182 = vmul.f32 %v177, %v181
  %vm183 = vweird.f32 %v176
  %vm184 = vweird.f32 %v177
  %vm185 = vmor %vm183, %vm184
  %v186 = vsel %vm185, %v177, %v182
  %v187 = vmul.f32 %v172, %v186
  %v188 = vmul.f32 %v173, %v186
  %v189 = vmul.f32 %v174, %v186
  %v190 = vmul.f32 %v175, %v186
  %192 = vset.pattern.permute.xlu0 0
  %193 = vperm.xlu0 %192, %v135
  %v194 = vpop.permute.xlu0 %193
  %v196 = vadd.f32 %v187, %v194
  %v197 = vadd.f32 %v188, %v194
  %v198 = vadd.f32 %v189, %v194
  %v199 = vadd.f32 %v190, %v194
  %v200 = vmax.f32 %v196, 0.0
  %v201 = vmax.f32 %v197, 0.0
  %v202 = vmax.f32 %v198, 0.0
  %v203 = vmax.f32 %v199, 0.0
  %204 = vst [vmem:[#allocation2] sm:$0xff] 0.0
  %205 = vst [vmem:[#allocation2 + $0x8] sm:$0xff] 0.0
  %vm206 = vcmask 273408
  %207 = vst.msk [vmem:[#allocation2 + $0x10] sm:$0xf] %vm206, 0.0
  %v212 = vrot.slane %v201, 4
  %v213 = vrot.slane %v203, 4
  %v214 = vsel %vm136, %v200, %v212
  %v215 = vsel %vm136, %v202, %v213
  %216 = vrot.lane.b32.xlu0 %v214, 17
  %v217 = vpop.permute.xlu0 %216
  %218 = vrot.lane.b32.xlu0 %v215, 17
  %v219 = vpop.permute.xlu0 %218
  %v220 = vrot.slane %v217, 4
  %v221 = vrot.slane %v219, 4
  %vm222 = vcmask 138240
  %v223 = vsel %vm222, %v220, %v217
  %v224 = vsel %vm136, %v220, %v221
  %v225 = vsel %vm222, %v224, %v219
  %vm229 = vcmask 1043592
  %vm230 = vcmask 1047556
  %vm231 = vmor %vm230, %vm229
  %232 = vst.msk [vmem:[#allocation2] sm:$0xff] %vm231, %v223
  %233 = vst [vmem:[#allocation2 + $0x8] sm:$0xff] %v225
  %vm234 = vcmask 134144
  %235 = vst.msk [vmem:[#allocation2 + $0x10] sm:$0xf] %vm234, %v221
  %v236 = vld [vmem:[%s5] sm:$0xf]
  %v237 = vld [vmem:[#allocation2] sm:$0xff]
  %v238 = vld [vmem:[#allocation2 + $0x8] sm:$0xff]
  %vm239 = vcmp.ge.s32.totalorder %v38, 1
  %vm240 = vcmp.lt.s32.totalorder %v38, 17
  %vm241 = vmand %vm239, %vm240
  %vm242 = vcmp.ge.s32.totalorder %v40, 1
  %vm243 = vmand %vm241, %vm242
  %vm244 = vcmp.lt.s32.totalorder %v40, 17
  %vm245 = vmand %vm243, %vm244
  %v246 = vsel %vm245, 1, 0
  %v247 = vperm.slane %v246, 0
  %v248 = vperm.slane %v246, 1
  %v249 = vperm.slane %v246, 2
  %v250 = vperm.slane %v246, 3
  %vm251 = vcmp.eq.s32.totalorder %v247, 1
  %vm252 = vcmp.eq.s32.totalorder %v248, 1
  %vm253 = vcmp.eq.s32.totalorder %v249, 1
  %vm254 = vcmp.eq.s32.totalorder %v250, 1
  %257 = vst [vmem:[#allocation1] ss:$2 sm:$0xff] %v237
  %s258 = scalar_lea.vmem [#allocation1], 16
  %259 = vst [vmem:[%s258] ss:$2 sm:$0xff] %v238
  %v260 = vld.sshfl [vmem:[#allocation1] sm:$0xff pattern:$0x75316420]
  %v261 = vld.sshfl [vmem:[#allocation1 + $0x8] sm:$0xff pattern:$0x75316420]
  %v262 = vld.sshfl [vmem:[#allocation1 + $0x10] sm:$0xff pattern:$0x75316420]
  %v263 = vld.sshfl [vmem:[#allocation1 + $0x18] sm:$0xff pattern:$0x75316420]
  %v268 = vsel %vm251, %v260, 0.0
  %v269 = vsel %vm252, %v261, 0.0
  %v270 = vsel %vm253, %v262, 0.0
  %v271 = vsel %vm254, %v263, 0.0
  %273 = vset.pattern.permute.xlu0 0
  %274 = vperm.xlu0 %273, %v236
  %v275 = vpop.permute.xlu0 %274
  %v277 = vmul.f32 %v268, %v275
  %v278 = vmul.f32 %v269, %v275
  %v279 = vmul.f32 %v270, %v275
  %v280 = vmul.f32 %v271, %v275
  %v281 = vld [vmem:[#allocation2] sm:$0xff]
  %v282 = vld [vmem:[#allocation2 + $0x8] sm:$0xff]
  %v283 = vld [vmem:[#allocation2 + $0x10] sm:$0xf]
  %vm284 = vcmp.ge.s32.totalorder %v40, 0
  %vm285 = vmand %vm241, %vm284
  %vm286 = vcmp.lt.s32.totalorder %v40, 16
  %vm287 = vmand %vm285, %vm286
  %v288 = vsel %vm287, 1, 0
  %v289 = vperm.slane %v288, 0
  %v290 = vperm.slane %v288, 1
  %v291 = vperm.slane %v288, 2
  %v292 = vperm.slane %v288, 3
  %vm293 = vcmp.eq.s32.totalorder %v289, 1
  %vm294 = vcmp.eq.s32.totalorder %v290, 1
  %vm295 = vcmp.eq.s32.totalorder %v291, 1
  %vm296 = vcmp.eq.s32.totalorder %v292, 1
  %300 = vst [vmem:[#allocation1] ss:$2 sm:$0xff] %v281
  %s301 = scalar_lea.vmem [#allocation1], 16
  %302 = vst [vmem:[%s301] ss:$2 sm:$0xff] %v282
  %s303 = scalar_lea.vmem [#allocation1], 32
  %304 = vst [vmem:[%s303] ss:$2 sm:$0xff] %v283
  %v305 = vld.sshfl [vmem:[#allocation1] sm:$0xff pattern:$0x75316420]
  %v306 = vld.sshfl [vmem:[#allocation1 + $0x8] sm:$0xff pattern:$0x75316420]
  %v307 = vld.sshfl [vmem:[#allocation1 + $0x10] sm:$0xff pattern:$0x75316420]
  %v308 = vld.sshfl [vmem:[#allocation1 + $0x18] sm:$0xff pattern:$0x75316420]
  %v309 = vld.sshfl [vmem:[#allocation1 + $0x20] sm:$0xff pattern:$0x75316420]
  %310 = vrot.lane.b32.xlu0 %v305, 127
  %v311 = vpop.permute.xlu0 %310
  %312 = vrot.lane.b32.xlu0 %v306, 127
  %v313 = vpop.permute.xlu0 %312
  %314 = vrot.lane.b32.xlu0 %v307, 127
  %v315 = vpop.permute.xlu0 %314
  %316 = vrot.lane.b32.xlu0 %v308, 127
  %v317 = vpop.permute.xlu0 %316
  %318 = vrot.lane.b32.xlu0 %v309, 127
  %v319 = vpop.permute.xlu0 %318
  %vm320 = vcmask 1039360
  %v321 = vsel %vm320, %v311, %v313
  %v322 = vsel %vm320, %v313, %v315
  %v323 = vsel %vm320, %v315, %v317
  %v324 = vsel %vm320, %v317, %v319
  %v329 = vsel %vm293, %v321, 0.0
  %v330 = vsel %vm294, %v322, 0.0
  %v331 = vsel %vm295, %v323, 0.0
  %v332 = vsel %vm296, %v324, 0.0
  %333 = vset.pattern.permute.xlu0 1
  %334 = vperm.xlu0 %333, %v236
  %v335 = vpop.permute.xlu0 %334
  %v337 = vmul.f32 %v329, %v335
  %v338 = vmul.f32 %v330, %v335
  %v339 = vmul.f32 %v331, %v335
  %v340 = vmul.f32 %v332, %v335
  %v341 = vadd.f32 %v277, %v337
  %v342 = vadd.f32 %v278, %v338
  %v343 = vadd.f32 %v279, %v339
  %v344 = vadd.f32 %v280, %v340
  %v345 = vld [vmem:[#allocation2] sm:$0xff]
  %v346 = vld [vmem:[#allocation2 + $0x8] sm:$0xff]
  %v347 = vld [vmem:[#allocation2 + $0x10] sm:$0xf]
  %vm348 = vcmp.ge.s32.totalorder %v40, 4294967295
  %vm349 = vmand %vm241, %vm348
  %vm350 = vcmp.lt.s32.totalorder %v40, 15
  %vm351 = vmand %vm349, %vm350
  %v352 = vsel %vm351, 1, 0
  %v353 = vperm.slane %v352, 0
  %v354 = vperm.slane %v352, 1
  %v355 = vperm.slane %v352, 2
  %v356 = vperm.slane %v352, 3
  %vm357 = vcmp.eq.s32.totalorder %v353, 1
  %vm358 = vcmp.eq.s32.totalorder %v354, 1
  %vm359 = vcmp.eq.s32.totalorder %v355, 1
  %vm360 = vcmp.eq.s32.totalorder %v356, 1
  %364 = vst [vmem:[#allocation1] ss:$2 sm:$0xff] %v345
  %s365 = scalar_lea.vmem [#allocation1], 16
  %366 = vst [vmem:[%s365] ss:$2 sm:$0xff] %v346
  %s367 = scalar_lea.vmem [#allocation1], 32
  %368 = vst [vmem:[%s367] ss:$2 sm:$0xff] %v347
  %v369 = vld.sshfl [vmem:[#allocation1] sm:$0xff pattern:$0x75316420]
  %v370 = vld.sshfl [vmem:[#allocation1 + $0x8] sm:$0xff pattern:$0x75316420]
  %v371 = vld.sshfl [vmem:[#allocation1 + $0x10] sm:$0xff pattern:$0x75316420]
  %v372 = vld.sshfl [vmem:[#allocation1 + $0x18] sm:$0xff pattern:$0x75316420]
  %v373 = vld.sshfl [vmem:[#allocation1 + $0x20] sm:$0xff pattern:$0x75316420]
  %374 = vrot.lane.b32.xlu0 %v369, 126
  %v375 = vpop.permute.xlu0 %374
  %376 = vrot.lane.b32.xlu0 %v370, 126
  %v377 = vpop.permute.xlu0 %376
  %378 = vrot.lane.b32.xlu0 %v371, 126
  %v379 = vpop.permute.xlu0 %378
  %380 = vrot.lane.b32.xlu0 %v372, 126
  %v381 = vpop.permute.xlu0 %380
  %382 = vrot.lane.b32.xlu0 %v373, 126
  %v383 = vpop.permute.xlu0 %382
  %vm384 = vcmask 1031168
  %v385 = vsel %vm384, %v375, %v377
  %v386 = vsel %vm384, %v377, %v379
  %v387 = vsel %vm384, %v379, %v381
  %v388 = vsel %vm384, %v381, %v383
  %v393 = vsel %vm357, %v385, 0.0
  %v394 = vsel %vm358, %v386, 0.0
  %v395 = vsel %vm359, %v387, 0.0
  %v396 = vsel %vm360, %v388, 0.0
  %397 = vset.pattern.permute.xlu0 2
  %398 = vperm.xlu0 %397, %v236
  %v399 = vpop.permute.xlu0 %398
  %v401 = vmul.f32 %v393, %v399
  %v402 = vmul.f32 %v394, %v399
  %v403 = vmul.f32 %v395, %v399
  %v404 = vmul.f32 %v396, %v399
  %v405 = vadd.f32 %v341, %v401
  %v406 = vadd.f32 %v342, %v402
  %v407 = vadd.f32 %v343, %v403
  %v408 = vadd.f32 %v344, %v404
  %v409 = vld [vmem:[#allocation2] sm:$0xff]
  %v410 = vld [vmem:[#allocation2 + $0x8] sm:$0xff]
  %v411 = vld [vmem:[#allocation2 + $0x10] sm:$0xf]
  %vm412 = vcmp.ge.s32.totalorder %v38, 0
  %vm413 = vcmp.lt.s32.totalorder %v38, 16
  %vm414 = vmand %vm412, %vm413
  %vm415 = vmand %vm414, %vm242
  %vm416 = vmand %vm415, %vm244
  %v417 = vsel %vm416, 1, 0
  %v418 = vperm.slane %v417, 0
  %v419 = vperm.slane %v417, 1
  %v420 = vperm.slane %v417, 2
  %v421 = vperm.slane %v417, 3
  %vm422 = vcmp.eq.s32.totalorder %v418, 1
  %vm423 = vcmp.eq.s32.totalorder %v419, 1
  %vm424 = vcmp.eq.s32.totalorder %v420, 1
  %vm425 = vcmp.eq.s32.totalorder %v421, 1
  %429 = vst [vmem:[#allocation1] ss:$2 sm:$0xff] %v409
  %s430 = scalar_lea.vmem [#allocation1], 16
  %431 = vst [vmem:[%s430] ss:$2 sm:$0xff] %v410
  %s432 = scalar_lea.vmem [#allocation1], 32
  %433 = vst [vmem:[%s432] ss:$2 sm:$0xff] %v411
  %v434 = vld.sshfl [vmem:[#allocation1] sm:$0xff pattern:$0x75316420]
  %v435 = vld.sshfl [vmem:[#allocation1 + $0x8] sm:$0xff pattern:$0x75316420]
  %v436 = vld.sshfl [vmem:[#allocation1 + $0x10] sm:$0xff pattern:$0x75316420]
  %v437 = vld.sshfl [vmem:[#allocation1 + $0x18] sm:$0xff pattern:$0x75316420]
  %v438 = vld.sshfl [vmem:[#allocation1 + $0x20] sm:$0xff pattern:$0x75316420]
  %439 = vrot.lane.b32.xlu0 %v434, 112
  %v440 = vpop.permute.xlu0 %439
  %441 = vrot.lane.b32.xlu0 %v435, 112
  %v442 = vpop.permute.xlu0 %441
  %443 = vrot.lane.b32.xlu0 %v436, 112
  %v444 = vpop.permute.xlu0 %443
  %445 = vrot.lane.b32.xlu0 %v437, 112
  %v446 = vpop.permute.xlu0 %445
  %447 = vrot.lane.b32.xlu0 %v438, 112
  %v448 = vpop.permute.xlu0 %447
  %vm449 = vcmask 916480
  %v450 = vsel %vm449, %v440, %v442
  %v451 = vsel %vm449, %v442, %v444
  %v452 = vsel %vm449, %v444, %v446
  %v453 = vsel %vm449, %v446, %v448
  %v458 = vsel %vm422, %v450, 0.0
  %v459 = vsel %vm423, %v451, 0.0
  %v460 = vsel %vm424, %v452, 0.0
  %v461 = vsel %vm425, %v453, 0.0
  %462 = vset.pattern.permute.xlu0 3
  %463 = vperm.xlu0 %462, %v236
  %v464 = vpop.permute.xlu0 %463
  %v466 = vmul.f32 %v458, %v464
  %v467 = vmul.f32 %v459, %v464
  %v468 = vmul.f32 %v460, %v464
  %v469 = vmul.f32 %v461, %v464
  %v470 = vadd.f32 %v405, %v466
  %v471 = vadd.f32 %v406, %v467
  %v472 = vadd.f32 %v407, %v468
  %v473 = vadd.f32 %v408, %v469
  %v474 = vld [vmem:[#allocation2] sm:$0xff]
  %v475 = vld [vmem:[#allocation2 + $0x8] sm:$0xff]
  %v476 = vld [vmem:[#allocation2 + $0x10] sm:$0xf]
  %477 = vset.pattern.permute.xlu0 4
  %478 = vperm.xlu0 %477, %v236
  %v479 = vpop.permute.xlu0 %478
  %v481 = vunpack.c.l.s4 839922192
  %v482 = vunpack.c.0.s8 %v481
  %v483 = vperm.slane %v479, %v482
  %v485 = vmul.f32 %v474, %v483
  %v486 = vmul.f32 %v475, %v483
  %v487 = vmul.f32 %v476, %v483
  %491 = vst [vmem:[#allocation1] ss:$2 sm:$0xff] %v485
  %s492 = scalar_lea.vmem [#allocation1], 16
  %493 = vst [vmem:[%s492] ss:$2 sm:$0xff] %v486
  %s494 = scalar_lea.vmem [#allocation1], 32
  %495 = vst [vmem:[%s494] ss:$2 sm:$0xff] %v487
  %v496 = vld.sshfl [vmem:[#allocation1] sm:$0xff pattern:$0x75316420]
  %v497 = vld.sshfl [vmem:[#allocation1 + $0x8] sm:$0xff pattern:$0x75316420]
  %v498 = vld.sshfl [vmem:[#allocation1 + $0x10] sm:$0xff pattern:$0x75316420]
  %v499 = vld.sshfl [vmem:[#allocation1 + $0x18] sm:$0xff pattern:$0x75316420]
  %v500 = vld.sshfl [vmem:[#allocation1 + $0x20] sm:$0xff pattern:$0x75316420]
  %501 = vrot.lane.b32.xlu0 %v496, 111
  %v502 = vpop.permute.xlu0 %501
  %503 = vrot.lane.b32.xlu0 %v497, 111
  %v504 = vpop.permute.xlu0 %503
  %505 = vrot.lane.b32.xlu0 %v498, 111
  %v506 = vpop.permute.xlu0 %505
  %507 = vrot.lane.b32.xlu0 %v499, 111
  %v508 = vpop.permute.xlu0 %507
  %509 = vrot.lane.b32.xlu0 %v500, 111
  %v510 = vpop.permute.xlu0 %509
  %vm511 = vcmask 908288
  %v512 = vsel %vm511, %v502, %v504
  %v513 = vsel %vm511, %v504, %v506
  %v514 = vsel %vm511, %v506, %v508
  %v515 = vsel %vm511, %v508, %v510
  %v520 = vadd.f32 %v470, %v512
  %v521 = vadd.f32 %v471, %v513
  %v522 = vadd.f32 %v472, %v514
  %v523 = vadd.f32 %v473, %v515
  %v524 = vld [vmem:[#allocation2] sm:$0xff]
  %v525 = vld [vmem:[#allocation2 + $0x8] sm:$0xff]
  %v526 = vld [vmem:[#allocation2 + $0x10] sm:$0xf]
  %vm527 = vmand %vm414, %vm348
  %vm528 = vmand %vm527, %vm350
  %v529 = vsel %vm528, 1, 0
  %v530 = vperm.slane %v529, 0
  %v531 = vperm.slane %v529, 1
  %v532 = vperm.slane %v529, 2
  %v533 = vperm.slane %v529, 3
  %vm534 = vcmp.eq.s32.totalorder %v530, 1
  %vm535 = vcmp.eq.s32.totalorder %v531, 1
  %vm536 = vcmp.eq.s32.totalorder %v532, 1
  %vm537 = vcmp.eq.s32.totalorder %v533, 1
  %541 = vst [vmem:[#allocation1] ss:$2 sm:$0xff] %v524
  %s542 = scalar_lea.vmem [#allocation1], 16
  %543 = vst [vmem:[%s542] ss:$2 sm:$0xff] %v525
  %s544 = scalar_lea.vmem [#allocation1], 32
  %545 = vst [vmem:[%s544] ss:$2 sm:$0xff] %v526
  %v546 = vld.sshfl [vmem:[#allocation1] sm:$0xff pattern:$0x75316420]
  %v547 = vld.sshfl [vmem:[#allocation1 + $0x8] sm:$0xff pattern:$0x75316420]
  %v548 = vld.sshfl [vmem:[#allocation1 + $0x10] sm:$0xff pattern:$0x75316420]
  %v549 = vld.sshfl [vmem:[#allocation1 + $0x18] sm:$0xff pattern:$0x75316420]
  %v550 = vld.sshfl [vmem:[#allocation1 + $0x20] sm:$0xff pattern:$0x75316420]
  %551 = vrot.lane.b32.xlu0 %v546, 110
  %v552 = vpop.permute.xlu0 %551
  %553 = vrot.lane.b32.xlu0 %v547, 110
  %v554 = vpop.permute.xlu0 %553
  %555 = vrot.lane.b32.xlu0 %v548, 110
  %v556 = vpop.permute.xlu0 %555
  %557 = vrot.lane.b32.xlu0 %v549, 110
  %v558 = vpop.permute.xlu0 %557
  %559 = vrot.lane.b32.xlu0 %v550, 110
  %v560 = vpop.permute.xlu0 %559
  %vm561 = vcmask 900096
  %v562 = vsel %vm561, %v552, %v554
  %v563 = vsel %vm561, %v554, %v556
  %v564 = vsel %vm561, %v556, %v558
  %v565 = vsel %vm561, %v558, %v560
  %v570 = vsel %vm534, %v562, 0.0
  %v571 = vsel %vm535, %v563, 0.0
  %v572 = vsel %vm536, %v564, 0.0
  %v573 = vsel %vm537, %v565, 0.0
  %574 = vset.pattern.permute.xlu0 5
  %575 = vperm.xlu0 %574, %v236
  %v576 = vpop.permute.xlu0 %575
  %v578 = vmul.f32 %v570, %v576
  %v579 = vmul.f32 %v571, %v576
  %v580 = vmul.f32 %v572, %v576
  %v581 = vmul.f32 %v573, %v576
  %v582 = vadd.f32 %v520, %v578
  %v583 = vadd.f32 %v521, %v579
  %v584 = vadd.f32 %v522, %v580
  %v585 = vadd.f32 %v523, %v581
  %v586 = vld [vmem:[#allocation2] sm:$0xff]
  %v587 = vld [vmem:[#allocation2 + $0x8] sm:$0xff]
  %v588 = vld [vmem:[#allocation2 + $0x10] sm:$0xf]
  %vm589 = vcmp.ge.s32.totalorder %v38, 4294967295
  %vm590 = vcmp.lt.s32.totalorder %v38, 15
  %vm591 = vmand %vm589, %vm590
  %vm592 = vmand %vm591, %vm242
  %vm593 = vmand %vm592, %vm244
  %v594 = vsel %vm593, 1, 0
  %v595 = vperm.slane %v594, 0
  %v596 = vperm.slane %v594, 1
  %v597 = vperm.slane %v594, 2
  %v598 = vperm.slane %v594, 3
  %vm599 = vcmp.eq.s32.totalorder %v595, 1
  %vm600 = vcmp.eq.s32.totalorder %v596, 1
  %vm601 = vcmp.eq.s32.totalorder %v597, 1
  %vm602 = vcmp.eq.s32.totalorder %v598, 1
  %606 = vst [vmem:[#allocation1] ss:$2 sm:$0xff] %v586
  %s607 = scalar_lea.vmem [#allocation1], 16
  %608 = vst [vmem:[%s607] ss:$2 sm:$0xff] %v587
  %s609 = scalar_lea.vmem [#allocation1], 32
  %610 = vst [vmem:[%s609] ss:$2 sm:$0xff] %v588
  %v611 = vld.sshfl [vmem:[#allocation1] sm:$0xff pattern:$0x75316420]
  %v612 = vld.sshfl [vmem:[#allocation1 + $0x8] sm:$0xff pattern:$0x75316420]
  %v613 = vld.sshfl [vmem:[#allocation1 + $0x10] sm:$0xff pattern:$0x75316420]
  %v614 = vld.sshfl [vmem:[#allocation1 + $0x18] sm:$0xff pattern:$0x75316420]
  %v615 = vld.sshfl [vmem:[#allocation1 + $0x20] sm:$0xff pattern:$0x75316420]
  %616 = vrot.lane.b32.xlu0 %v611, 96
  %v617 = vpop.permute.xlu0 %616
  %618 = vrot.lane.b32.xlu0 %v612, 96
  %v619 = vpop.permute.xlu0 %618
  %620 = vrot.lane.b32.xlu0 %v613, 96
  %v621 = vpop.permute.xlu0 %620
  %622 = vrot.lane.b32.xlu0 %v614, 96
  %v623 = vpop.permute.xlu0 %622
  %624 = vrot.lane.b32.xlu0 %v615, 96
  %v625 = vpop.permute.xlu0 %624
  %vm626 = vcmask 785408
  %v627 = vsel %vm626, %v617, %v619
  %v628 = vsel %vm626, %v619, %v621
  %v629 = vsel %vm626, %v621, %v623
  %v630 = vsel %vm626, %v623, %v625
  %v635 = vsel %vm599, %v627, 0.0
  %v636 = vsel %vm600, %v628, 0.0
  %v637 = vsel %vm601, %v629, 0.0
  %v638 = vsel %vm602, %v630, 0.0
  %639 = vset.pattern.permute.xlu0 6
  %640 = vperm.xlu0 %639, %v236
  %v641 = vpop.permute.xlu0 %640
  %v643 = vmul.f32 %v635, %v641
  %v644 = vmul.f32 %v636, %v641
  %v645 = vmul.f32 %v637, %v641
  %v646 = vmul.f32 %v638, %v641
  %v647 = vadd.f32 %v582, %v643
  %v648 = vadd.f32 %v583, %v644
  %v649 = vadd.f32 %v584, %v645
  %v650 = vadd.f32 %v585, %v646
  %v651 = vld [vmem:[#allocation2] sm:$0xff]
  %v652 = vld [vmem:[#allocation2 + $0x8] sm:$0xff]
  %v653 = vld [vmem:[#allocation2 + $0x10] sm:$0xf]
  %vm654 = vmand %vm591, %vm284
  %vm655 = vmand %vm654, %vm286
  %v656 = vsel %vm655, 1, 0
  %v657 = vperm.slane %v656, 0
  %v658 = vperm.slane %v656, 1
  %v659 = vperm.slane %v656, 2
  %v660 = vperm.slane %v656, 3
  %vm661 = vcmp.eq.s32.totalorder %v657, 1
  %vm662 = vcmp.eq.s32.totalorder %v658, 1
  %vm663 = vcmp.eq.s32.totalorder %v659, 1
  %vm664 = vcmp.eq.s32.totalorder %v660, 1
  %668 = vst [vmem:[#allocation1] ss:$2 sm:$0xff] %v651
  %s669 = scalar_lea.vmem [#allocation1], 16
  %670 = vst [vmem:[%s669] ss:$2 sm:$0xff] %v652
  %s671 = scalar_lea.vmem [#allocation1], 32
  %672 = vst [vmem:[%s671] ss:$2 sm:$0xff] %v653
  %v673 = vld.sshfl [vmem:[#allocation1] sm:$0xff pattern:$0x75316420]
  %v674 = vld.sshfl [vmem:[#allocation1 + $0x8] sm:$0xff pattern:$0x75316420]
  %v675 = vld.sshfl [vmem:[#allocation1 + $0x10] sm:$0xff pattern:$0x75316420]
  %v676 = vld.sshfl [vmem:[#allocation1 + $0x18] sm:$0xff pattern:$0x75316420]
  %v677 = vld.sshfl [vmem:[#allocation1 + $0x20] sm:$0xff pattern:$0x75316420]
  %678 = vrot.lane.b32.xlu0 %v673, 95
  %v679 = vpop.permute.xlu0 %678
  %680 = vrot.lane.b32.xlu0 %v674, 95
  %v681 = vpop.permute.xlu0 %680
  %682 = vrot.lane.b32.xlu0 %v675, 95
  %v683 = vpop.permute.xlu0 %682
  %684 = vrot.lane.b32.xlu0 %v676, 95
  %v685 = vpop.permute.xlu0 %684
  %686 = vrot.lane.b32.xlu0 %v677, 95
  %v687 = vpop.permute.xlu0 %686
  %vm688 = vcmask 777216
  %v689 = vsel %vm688, %v679, %v681
  %v690 = vsel %vm688, %v681, %v683
  %v691 = vsel %vm688, %v683, %v685
  %v692 = vsel %vm688, %v685, %v687
  %v697 = vsel %vm661, %v689, 0.0
  %v698 = vsel %vm662, %v690, 0.0
  %v699 = vsel %vm663, %v691, 0.0
  %v700 = vsel %vm664, %v692, 0.0
  %701 = vset.pattern.permute.xlu0 7
  %702 = vperm.xlu0 %701, %v236
  %v703 = vpop.permute.xlu0 %702
  %v705 = vmul.f32 %v697, %v703
  %v706 = vmul.f32 %v698, %v703
  %v707 = vmul.f32 %v699, %v703
  %v708 = vmul.f32 %v700, %v703
  %v709 = vadd.f32 %v647, %v705
  %v710 = vadd.f32 %v648, %v706
  %v711 = vadd.f32 %v649, %v707
  %v712 = vadd.f32 %v650, %v708
  %v713 = vld [vmem:[#allocation2] sm:$0xff]
  %v714 = vld [vmem:[#allocation2 + $0x8] sm:$0xff]
  %v715 = vld [vmem:[#allocation2 + $0x10] sm:$0xf]
  %vm716 = vmand %vm591, %vm348
  %vm717 = vmand %vm716, %vm350
  %v718 = vsel %vm717, 1, 0
  %v719 = vperm.slane %v718, 0
  %v720 = vperm.slane %v718, 1
  %v721 = vperm.slane %v718, 2
  %v722 = vperm.slane %v718, 3
  %vm723 = vcmp.eq.s32.totalorder %v719, 1
  %vm724 = vcmp.eq.s32.totalorder %v720, 1
  %vm725 = vcmp.eq.s32.totalorder %v721, 1
  %vm726 = vcmp.eq.s32.totalorder %v722, 1
  %730 = vst [vmem:[#allocation1] ss:$2 sm:$0xff] %v713
  %s731 = scalar_lea.vmem [#allocation1], 16
  %732 = vst [vmem:[%s731] ss:$2 sm:$0xff] %v714
  %s733 = scalar_lea.vmem [#allocation1], 32
  %734 = vst [vmem:[%s733] ss:$2 sm:$0xff] %v715
  %v735 = vld.sshfl [vmem:[#allocation1] sm:$0xff pattern:$0x75316420]
  %v736 = vld.sshfl [vmem:[#allocation1 + $0x8] sm:$0xff pattern:$0x75316420]
  %v737 = vld.sshfl [vmem:[#allocation1 + $0x10] sm:$0xff pattern:$0x75316420]
  %v738 = vld.sshfl [vmem:[#allocation1 + $0x18] sm:$0xff pattern:$0x75316420]
  %v739 = vld.sshfl [vmem:[#allocation1 + $0x20] sm:$0xff pattern:$0x75316420]
  %740 = vrot.lane.b32.xlu0 %v735, 94
  %v741 = vpop.permute.xlu0 %740
  %742 = vrot.lane.b32.xlu0 %v736, 94
  %v743 = vpop.permute.xlu0 %742
  %744 = vrot.lane.b32.xlu0 %v737, 94
  %v745 = vpop.permute.xlu0 %744
  %746 = vrot.lane.b32.xlu0 %v738, 94
  %v747 = vpop.permute.xlu0 %746
  %748 = vrot.lane.b32.xlu0 %v739, 94
  %v749 = vpop.permute.xlu0 %748
  %vm750 = vcmask 769024
  %v751 = vsel %vm750, %v741, %v743
  %v752 = vsel %vm750, %v743, %v745
  %v753 = vsel %vm750, %v745, %v747
  %v754 = vsel %vm750, %v747, %v749
  %v759 = vsel %vm723, %v751, 0.0
  %v760 = vsel %vm724, %v752, 0.0
  %v761 = vsel %vm725, %v753, 0.0
  %v762 = vsel %vm726, %v754, 0.0
  %763 = vset.pattern.permute.xlu0 8
  %764 = vperm.xlu0 %763, %v236
  %v765 = vpop.permute.xlu0 %764
  %v767 = vmul.f32 %v759, %v765
  %v768 = vmul.f32 %v760, %v765
  %v769 = vmul.f32 %v761, %v765
  %v770 = vmul.f32 %v762, %v765
  %v771 = vadd.f32 %v709, %v767
  %v772 = vadd.f32 %v710, %v768
  %v773 = vadd.f32 %v711, %v769
  %v774 = vadd.f32 %v712, %v770
  %v775 = vld [vmem:[%s6] sm:$0xf]
  %v776 = vld [vmem:[%s7] sm:$0xf]
  %v777 = vsel %vm136, %v771, 0.0
  %v778 = vsel %vm136, %v772, 0.0
  %v779 = vadd.f32 %v777, %v778
  %v780 = vsel %vm136, %v773, 0.0
  %v781 = vadd.f32 %v779, %v780
  %v782 = vsel %vm136, %v774, 0.0
  %v783 = vadd.f32 %v781, %v782
  %784 = vadd.xlane.f32.xlu0 %v783
  %v785 = vpop.xlane.xlu0 %784
  %v786 = vmul.f32 %v785, 0.001953125
  %v787 = vmul.f32 %v771, %v771
  %v788 = vmul.f32 %v772, %v772
  %v789 = vmul.f32 %v773, %v773
  %v790 = vmul.f32 %v774, %v774
  %v791 = vsel %vm136, %v787, 0.0
  %v792 = vsel %vm136, %v788, 0.0
  %v793 = vadd.f32 %v791, %v792
  %v794 = vsel %vm136, %v789, 0.0
  %v795 = vadd.f32 %v793, %v794
  %v796 = vsel %vm136, %v790, 0.0
  %v797 = vadd.f32 %v795, %v796
  %798 = vadd.xlane.f32.xlu0 %v797
  %v799 = vpop.xlane.xlu0 %798
  %v800 = vmul.f32 %v799, 0.001953125
  %v801 = vmul.f32 %v786, %v786
  %v802 = vsub.f32 %v800, %v801
  %v803 = vsub.f32 %v771, %v786
  %v804 = vsub.f32 %v772, %v786
  %v805 = vsub.f32 %v773, %v786
  %v806 = vsub.f32 %v774, %v786
  %808 = vset.pattern.permute.xlu0 0
  %809 = vperm.xlu0 %808, %v775
  %v810 = vpop.permute.xlu0 %809
  %v812 = vmul.f32 %v810, %v803
  %v813 = vmul.f32 %v810, %v804
  %v814 = vmul.f32 %v810, %v805
  %v815 = vmul.f32 %v810, %v806
  %v816 = vadd.f32 %v802, 1e-05
  %v817 = vrsqrt.pop %v816
  %v818 = vmul.f32 %v817, %v816
  %v819 = vmul.f32 %v818, %v817
  %v820 = vmul.f32 0.5, %v819
  %v821 = vsub.f32 1.5, %v820
  %v822 = vmul.f32 %v817, %v821
  %vm823 = vweird.f32 %v816
  %vm824 = vweird.f32 %v817
  %vm825 = vmor %vm823, %vm824
  %v826 = vsel %vm825, %v817, %v822
  %v827 = vmul.f32 %v812, %v826
  %v828 = vmul.f32 %v813, %v826
  %v829 = vmul.f32 %v814, %v826
  %v830 = vmul.f32 %v815, %v826
  %832 = vset.pattern.permute.xlu0 0
  %833 = vperm.xlu0 %832, %v776
  %v834 = vpop.permute.xlu0 %833
  %v836 = vadd.f32 %v827, %v834
  %v837 = vadd.f32 %v828, %v834
  %v838 = vadd.f32 %v829, %v834
  %v839 = vadd.f32 %v830, %v834
  %v840 = vld [vmem:[%s8] sm:$0xff]
  %v841 = vld [vmem:[%s8 + $0x8] sm:$0xff]
  %vm842 = vcmask 31744
  %v844 = vsel %vm842, %v840, 0
  %v847 = vsel %vm842, %v841, 0
  %v850 = vsel %vm136, %v836, 0
  %v853 = vsel %vm136, %v837, 0
  %v856 = vsel %vm136, %v838, 0
  %v859 = vsel %vm136, %v839, 0
  %861 = vmatpush.msra.mxu0 0.0
  %862 = vmatpush.msra.mxu0 0.0
  %863 = vmatpush.msra.mxu0 0.0
  %864 = vmatpush.msra.mxu0 0.0
  %865 = vmatpush.msra.mxu0 0.0
  %866 = vmatpush.msra.mxu0 0.0
  %867 = vmatpush.msra.mxu0 0.0
  %868 = vmatpush.msra.mxu0 0.0
  %869 = vmatpush.msra.mxu0 0.0
  %870 = vmatpush.msra.mxu0 0.0
  %871 = vmatpush.msra.mxu0 0.0
  %872 = vmatpush.msra.mxu0 0.0
  %873 = vmatpush.msra.mxu0 0.0
  %874 = vmatpush.msra.mxu0 0.0
  %875 = vmatpush.msra.mxu0 0.0
  %876 = vmatpush.msra.mxu0 %v850
  %877 = vmatmul.f32.gmra.mxu0 %v844
  %v878 = vpop.f32.mrf.mxu0
  %v879 = vadd.f32 0.0, %v878
  %880 = vmatmul.f32.gmra.mxu0 %v847
  %v881 = vpop.f32.mrf.mxu0
  %v882 = vadd.f32 0.0, %v881
  %883 = vdwg.mxu0
  %884 = vmatpush.msra.mxu0 0.0
  %885 = vmatpush.msra.mxu0 0.0
  %886 = vmatpush.msra.mxu0 0.0
  %887 = vmatpush.msra.mxu0 0.0
  %888 = vmatpush.msra.mxu0 0.0
  %889 = vmatpush.msra.mxu0 0.0
  %890 = vmatpush.msra.mxu0 0.0
  %891 = vmatpush.msra.mxu0 0.0
  %892 = vmatpush.msra.mxu0 0.0
  %893 = vmatpush.msra.mxu0 0.0
  %894 = vmatpush.msra.mxu0 0.0
  %895 = vmatpush.msra.mxu0 0.0
  %896 = vmatpush.msra.mxu0 0.0
  %897 = vmatpush.msra.mxu0 0.0
  %898 = vmatpush.msra.mxu0 0.0
  %899 = vmatpush.msra.mxu0 %v853
  %900 = vmatmul.f32.gmra.mxu0 %v844
  %v901 = vpop.f32.mrf.mxu0
  %v902 = vadd.f32 0.0, %v901
  %903 = vmatmul.f32.gmra.mxu0 %v847
  %v904 = vpop.f32.mrf.mxu0
  %v905 = vadd.f32 0.0, %v904
  %906 = vdwg.mxu0
  %907 = vmatpush.msra.mxu0 0.0
  %908 = vmatpush.msra.mxu0 0.0
  %909 = vmatpush.msra.mxu0 0.0
  %910 = vmatpush.msra.mxu0 0.0
  %911 = vmatpush.msra.mxu0 0.0
  %912 = vmatpush.msra.mxu0 0.0
  %913 = vmatpush.msra.mxu0 0.0
  %914 = vmatpush.msra.mxu0 0.0
  %915 = vmatpush.msra.mxu0 0.0
  %916 = vmatpush.msra.mxu0 0.0
  %917 = vmatpush.msra.mxu0 0.0
  %918 = vmatpush.msra.mxu0 0.0
  %919 = vmatpush.msra.mxu0 0.0
  %920 = vmatpush.msra.mxu0 0.0
  %921 = vmatpush.msra.mxu0 0.0
  %922 = vmatpush.msra.mxu0 %v856
  %923 = vmatmul.f32.gmra.mxu0 %v844
  %v924 = vpop.f32.mrf.mxu0
  %v925 = vadd.f32 0.0, %v924
  %926 = vmatmul.f32.gmra.mxu0 %v847
  %v927 = vpop.f32.mrf.mxu0
  %v928 = vadd.f32 0.0, %v927
  %929 = vdwg.mxu0
  %930 = vmatpush.msra.mxu0 0.0
  %931 = vmatpush.msra.mxu0 0.0
  %932 = vmatpush.msra.mxu0 0.0
  %933 = vmatpush.msra.mxu0 0.0
  %934 = vmatpush.msra.mxu0 0.0
  %935 = vmatpush.msra.mxu0 0.0
  %936 = vmatpush.msra.mxu0 0.0
  %937 = vmatpush.msra.mxu0 0.0
  %938 = vmatpush.msra.mxu0 0.0
  %939 = vmatpush.msra.mxu0 0.0
  %940 = vmatpush.msra.mxu0 0.0
  %941 = vmatpush.msra.mxu0 0.0
  %942 = vmatpush.msra.mxu0 0.0
  %943 = vmatpush.msra.mxu0 0.0
  %944 = vmatpush.msra.mxu0 0.0
  %945 = vmatpush.msra.mxu0 %v859
  %946 = vmatmul.f32.gmra.mxu0 %v844
  %v947 = vpop.f32.mrf.mxu0
  %v948 = vadd.f32 0.0, %v947
  %949 = vmatmul.f32.gmra.mxu0 %v847
  %v950 = vpop.f32.mrf.mxu0
  %v951 = vadd.f32 0.0, %v950
  %952 = vdwg.mxu0
  %v953 = vld [vmem:[%s9] sm:$0xff]
  %v954 = vld [vmem:[%s9 + $0x8] sm:$0xff]
  %v955 = vld [vmem:[%s10] sm:$0xff]
  %v956 = vld [vmem:[%s10 + $0x8] sm:$0xff]
  %v957 = vadd.f32 %v879, %v902
  %v958 = vadd.f32 %v957, %v925
  %v959 = vadd.f32 %v958, %v948
  %960 = vadd.xlane.f32.xlu0 %v959
  %v961 = vpop.xlane.xlu0 %960
  %v962 = vadd.f32 %v882, %v905
  %v963 = vadd.f32 %v962, %v928
  %v964 = vadd.f32 %v963, %v951
  %965 = vadd.xlane.f32.xlu0 %v964
  %v966 = vpop.xlane.xlu0 %965
  %v967 = vmul.f32 %v961, 0.001953125
  %v968 = vmul.f32 %v966, 0.001953125
  %v969 = vmul.f32 %v879, %v879
  %v970 = vmul.f32 %v902, %v902
  %v971 = vmul.f32 %v925, %v925
  %v972 = vmul.f32 %v948, %v948
  %v973 = vmul.f32 %v882, %v882
  %v974 = vmul.f32 %v905, %v905
  %v975 = vmul.f32 %v928, %v928
  %v976 = vmul.f32 %v951, %v951
  %v977 = vadd.f32 %v969, %v970
  %v978 = vadd.f32 %v977, %v971
  %v979 = vadd.f32 %v978, %v972
  %980 = vadd.xlane.f32.xlu0 %v979
  %v981 = vpop.xlane.xlu0 %980
  %v982 = vadd.f32 %v973, %v974
  %v983 = vadd.f32 %v982, %v975
  %v984 = vadd.f32 %v983, %v976
  %985 = vadd.xlane.f32.xlu0 %v984
  %v986 = vpop.xlane.xlu0 %985
  %v987 = vmul.f32 %v981, 0.001953125
  %v988 = vmul.f32 %v986, 0.001953125
  %v989 = vmul.f32 %v967, %v967
  %v990 = vmul.f32 %v968, %v968
  %v991 = vsub.f32 %v987, %v989
  %v992 = vsub.f32 %v988, %v990
  %v993 = vsub.f32 %v879, %v967
  %v994 = vsub.f32 %v902, %v967
  %v995 = vsub.f32 %v925, %v967
  %v996 = vsub.f32 %v948, %v967
  %v997 = vsub.f32 %v882, %v968
  %v998 = vsub.f32 %v905, %v968
  %v999 = vsub.f32 %v928, %v968
  %v1000 = vsub.f32 %v951, %v968
  %1002 = vset.pattern.permute.xlu0 0
  %1003 = vperm.xlu0 %1002, %v953
  %v1004 = vpop.permute.xlu0 %1003
  %1007 = vset.pattern.permute.xlu0 0
  %1008 = vperm.xlu0 %1007, %v954
  %v1009 = vpop.permute.xlu0 %1008
  %v1011 = vmul.f32 %v1004, %v993
  %v1012 = vmul.f32 %v1004, %v994
  %v1013 = vmul.f32 %v1004, %v995
  %v1014 = vmul.f32 %v1004, %v996
  %v1015 = vmul.f32 %v1009, %v997
  %v1016 = vmul.f32 %v1009, %v998
  %v1017 = vmul.f32 %v1009, %v999
  %v1018 = vmul.f32 %v1009, %v1000
  %v1019 = vadd.f32 %v991, 1e-05
  %v1020 = vadd.f32 %v992, 1e-05
  %v1021 = vrsqrt.pop %v1019
  %v1022 = vmul.f32 %v1021, %v1019
  %v1023 = vmul.f32 %v1022, %v1021
  %v1024 = vmul.f32 0.5, %v1023
  %v1025 = vsub.f32 1.5, %v1024
  %v1026 = vmul.f32 %v1021, %v1025
  %vm1027 = vweird.f32 %v1019
  %vm1028 = vweird.f32 %v1021
  %vm1029 = vmor %vm1027, %vm1028
  %v1030 = vsel %vm1029, %v1021, %v1026
  %v1031 = vrsqrt.pop %v1020
  %v1032 = vmul.f32 %v1031, %v1020
  %v1033 = vmul.f32 %v1032, %v1031
  %v1034 = vmul.f32 0.5, %v1033
  %v1035 = vsub.f32 1.5, %v1034
  %v1036 = vmul.f32 %v1031, %v1035
  %vm1037 = vweird.f32 %v1020
  %vm1038 = vweird.f32 %v1031
  %vm1039 = vmor %vm1037, %vm1038
  %v1040 = vsel %vm1039, %v1031, %v1036
  %v1041 = vmul.f32 %v1011, %v1030
  %v1042 = vmul.f32 %v1012, %v1030
  %v1043 = vmul.f32 %v1013, %v1030
  %v1044 = vmul.f32 %v1014, %v1030
  %v1045 = vmul.f32 %v1015, %v1040
  %v1046 = vmul.f32 %v1016, %v1040
  %v1047 = vmul.f32 %v1017, %v1040
  %v1048 = vmul.f32 %v1018, %v1040
  %1050 = vset.pattern.permute.xlu0 0
  %1051 = vperm.xlu0 %1050, %v955
  %v1052 = vpop.permute.xlu0 %1051
  %1055 = vset.pattern.permute.xlu0 0
  %1056 = vperm.xlu0 %1055, %v956
  %v1057 = vpop.permute.xlu0 %1056
  %v1059 = vadd.f32 %v1041, %v1052
  %v1060 = vadd.f32 %v1042, %v1052
  %v1061 = vadd.f32 %v1043, %v1052
  %v1062 = vadd.f32 %v1044, %v1052
  %v1063 = vadd.f32 %v1045, %v1057
  %v1064 = vadd.f32 %v1046, %v1057
  %v1065 = vadd.f32 %v1047, %v1057
  %v1066 = vadd.f32 %v1048, %v1057
  %v1067 = vadd.f32 %v1059, %v41
  %v1068 = vadd.f32 %v1060, %v42
  %v1069 = vadd.f32 %v1061, %v43
  %v1070 = vadd.f32 %v1062, %v44
  %v1071 = vadd.f32 %v1063, %v45
  %v1072 = vadd.f32 %v1064, %v46
  %v1073 = vadd.f32 %v1065, %v47
  %v1074 = vadd.f32 %v1066, %v48
  %v1075 = vmax.f32 %v1067, 0.0
  %v1076 = vmax.f32 %v1068, 0.0
  %v1077 = vmax.f32 %v1069, 0.0
  %v1078 = vmax.f32 %v1070, 0.0
  %v1079 = vmax.f32 %v1071, 0.0
  %v1080 = vmax.f32 %v1072, 0.0
  %v1081 = vmax.f32 %v1073, 0.0
  %v1082 = vmax.f32 %v1074, 0.0
  %1083 = vst [vmem:[%s11] sm:$0xff] %v1075
  %1084 = vst [vmem:[%s11 + $0x8] sm:$0xff] %v1076
  %1085 = vst [vmem:[%s11 + $0x10] sm:$0xff] %v1077
  %1086 = vst [vmem:[%s11 + $0x18] sm:$0xff] %v1078
  %1087 = vst [vmem:[%s11 + $0x20] sm:$0xff] %v1079
  %1088 = vst [vmem:[%s11 + $0x28] sm:$0xff] %v1080
  %1089 = vst [vmem:[%s11 + $0x30] sm:$0xff] %v1081
  %1090 = vst [vmem:[%s11 + $0x38] sm:$0xff] %v1082
  // Predicated region
  $region46: #{shufflenet_unit_forward.1} parent=0 // pred_check
    _
  $region47: #{shufflenet_unit_forward.1} parent=0 // pred_check_branch
    %1092 = sbr.rel (0) target = $region49
  $region48: #{shufflenet_unit_forward.1} parent=0 // pred_region
    _
  $region49: #{shufflenet_unit_forward.1} parent=0 // pred_fallthru
    _
  // Predicated region
  $region50: #{shufflenet_unit_forward.1} parent=0 // pred_check
    _
  $region51: #{shufflenet_unit_forward.1} parent=0 // pred_check_branch
    %1094 = sbr.rel (0) target = $region53
  $region52: #{shufflenet_unit_forward.1} parent=0 // pred_region
    _
  $region53: #{shufflenet_unit_forward.1} parent=0 // pred_fallthru
    _

</llo_original>
